<compile_context>
chip_gen: v6e
topology: v6e:2x2x1
jax: 0.10.0
libtpu: 0.0.40
codegen_flags: <defaults>
</compile_context>

<pallas_src>
import functools
import math

import jax
import jax.numpy as jnp
from jax.experimental import pallas as pl
from jax.experimental.pallas import tpu as pltpu


def make_positional_encoding(d_model: int, max_len: int = 500) -> jnp.ndarray:
    """Deterministic buffer construction, identical to the nn.Module __init__."""
    position = jnp.arange(0, max_len, dtype=jnp.float32)[:, None]           # (max_len, 1)
    div_term = jnp.exp(
        jnp.arange(0, d_model, 2, dtype=jnp.float32) * (-math.log(10000.0) / d_model)
    )                                                                         # (d_model/2,)
    pe = jnp.zeros((max_len, d_model), dtype=jnp.float32)
    pe = pe.at[:, 0::2].set(jnp.sin(position * div_term))
    pe = pe.at[:, 1::2].set(jnp.cos(position * div_term))
    return pe


def _fused_attention_model_kernel(
    ids_ref,     # (R, 1)    int32     R = batch_tile * L (batch folded into rows)
    knobs_ref,   # (R, 1)    f32
    emb_ref,     # (V, D)    mxu dtype embedding table
    pe_ref,      # (R, D)    f32       positional encoding tiled over the batch tile
    w_ref,       # (D, 6D+T) mxu dtype [Wq^T | Wk^T | Wv^T | Wo^T | W1^T | W2^T | Wfc^T]
    b_ref,       # (8, 3D)   f32       packed rows: kw, kb, bqkv, bo, b1, b2, bfc, 0
    out_ref,     # (batch_tile, T)
    *, batch_tile: int, nhead: int,
):
    f32 = jnp.float32
    V, D = emb_ref.shape
    R = ids_ref.shape[0]
    bB = batch_tile
    L = R // bB
    H = nhead
    dh = D // H
    T = out_ref.shape[-1]
    cdt = w_ref.dtype                       # MXU operand dtype (bf16 by default)
    scale = 1.0 / math.sqrt(dh)

    # Packed bias rows (kept f32; added after f32-accumulating matmuls).
    kw = b_ref[0:1, :D]
    kb = b_ref[1:2, :D]
    bqkv = b_ref[2:3, :]
    bo = b_ref[3:4, :D]
    b1 = b_ref[4:5, :D]
    b2 = b_ref[5:6, :D]
    bfc = b_ref[6:7, :T]

    def mm(a, w):                           # MXU matmul, f32 accumulation
        return jnp.dot(a.astype(cdt), w, preferred_element_type=f32)

    # ---- embedding lookup (one-hot matmul) + knob Linear(1,D) + pos-encoding ----
    ids = ids_ref[...]                      # (R, 1) int32
    onehot = (jax.lax.broadcasted_iota(jnp.int32, (R, V), 1) == ids).astype(cdt)
    x = jnp.dot(onehot, emb_ref[...], preferred_element_type=f32)         # (R, D)
    x = x + knobs_ref[...] * kw + kb + pe_ref[...]

    # ---- fused QKV projection: a single (R,D)@(D,3D) matmul ----
    qkv = mm(x, w_ref[:, 0:3 * D]) + bqkv                                 # (R, 3D)
    qkv = qkv.reshape(bB, L, 3 * D)

    # ---- per-head attention; heads are static lane slices of the fused qkv ----
    ctx = []
    for h in range(H):                      # static loop (H small)
        qh = qkv[:, :, h * dh:(h + 1) * dh] * scale                       # (bB, L, dh)
        kh = qkv[:, :, D + h * dh:D + (h + 1) * dh]
        vh = qkv[:, :, 2 * D + h * dh:2 * D + (h + 1) * dh]
        s = jnp.einsum("bqd,bkd->bqk", qh.astype(cdt), kh.astype(cdt),
                       preferred_element_type=f32)                        # (bB, L, L)
        s = s - jnp.max(s, axis=-1, keepdims=True)
        p = jnp.exp(s)                                                    # f32 softmax math
        p = p * pl.reciprocal(jnp.sum(p, axis=-1, keepdims=True), approx=True)
        ctx.append(jnp.einsum("bqk,bkd->bqd", p.astype(cdt), vh.astype(cdt),
                              preferred_element_type=f32))                # (bB, L, dh)
    # Concat heads along lanes -> one out-projection matmul.
    o = jnp.concatenate(ctx, axis=-1).reshape(R, D)                       # (R, D)

    # ---- attention out-projection + feed-forward ----
    attn = mm(o, w_ref[:, 3 * D:4 * D]) + bo
    h1 = jnp.maximum(mm(attn, w_ref[:, 4 * D:5 * D]) + b1, 0.0)
    y = mm(h1, w_ref[:, 5 * D:6 * D]) + b2                                # (R, D)

    # ---- mean over the sequence dim + final Linear head; one dense store ----
    pooled = jnp.mean(y.reshape(bB, L, D), axis=1)                        # (bB, D)
    logits = mm(pooled, w_ref[:, 6 * D:6 * D + T]) + bfc                  # (bB, T)
    out_ref[...] = logits.astype(out_ref.dtype)


def attention_model_forward(step_types, knobs, params, nhead,
                            *, mxu_dtype=jnp.bfloat16, batch_tile=None):
    """step_types: (B, L) int ids; knobs: (B, L) f32.  Returns (B, num_targets)."""
    B, L = step_types.shape
    V, D = params["emb"].shape
    T = params["Wfc"].shape[0]
    H = nhead
    assert D % H == 0

    if batch_tile is None:
        # Whole batch per grid step for small B (best on single-TC v5e/v6e and
        # removes per-step overhead); split into two "parallel" steps only when
        # each half still satisfies the (8,128) block rules (v7x megacore).
        batch_tile = B // 2 if (B >= 16 and B % 16 == 0) else B
    assert B % batch_tile == 0, "batch_tile must divide B"
    G = B // batch_tile
    R = batch_tile * L

    pe = make_positional_encoding(D, max_len=L)[:L]
    pe_tiled = jnp.tile(pe, (batch_tile, 1))                              # (R, D) f32

    # Fused weight slab (torch (out,in) weights stored transposed so the kernel
    # computes x @ W): columns = [Wq | Wk | Wv | Wo | W1 | W2 | Wfc] (each ^T).
    w_all = jnp.concatenate(
        [params["Wq"].T, params["Wk"].T, params["Wv"].T, params["Wo"].T,
         params["W1"].T, params["W2"].T, params["Wfc"].T], axis=1,
    ).astype(mxu_dtype)                                                   # (D, 6D+T)

    # Packed bias slab: 8 rows x 3D lanes, f32.
    W3 = 3 * D

    def _row(v):
        v = jnp.asarray(v, jnp.float32).reshape(-1)
        return jnp.pad(v, (0, W3 - v.shape[0]))

    biases = jnp.stack([
        _row(params["kw"]), _row(params["kb"]),
        _row(jnp.concatenate([params["bq"], params["bk"], params["bv"]])),
        _row(params["bo"]), _row(params["b1"]), _row(params["b2"]),
        _row(params["bfc"]), jnp.zeros((W3,), jnp.float32),
    ])                                                                    # (8, 3D)

    ids_col = step_types.astype(jnp.int32).reshape(B * L, 1)              # column layout
    knobs_col = knobs.astype(jnp.float32).reshape(B * L, 1)
    emb = params["emb"].astype(mxu_dtype)

    kernel = functools.partial(_fused_attention_model_kernel,
                               batch_tile=batch_tile, nhead=H)
    const = lambda shape: pl.BlockSpec(shape, lambda b: (0, 0))           # resident in VMEM

    out = pl.pallas_call(
        kernel,
        out_shape=jax.ShapeDtypeStruct((B, T), jnp.float32),
        grid_spec=pltpu.PrefetchScalarGridSpec(
            num_scalar_prefetch=0,
            grid=(G,),
            in_specs=[
                pl.BlockSpec((R, 1), lambda b: (b, 0)),   # step ids  (batch-tile rows)
                pl.BlockSpec((R, 1), lambda b: (b, 0)),   # knobs
                const((V, D)),                            # embedding table
                const((R, D)),                            # positional encoding (tiled)
                const((D, 6 * D + T)),                    # fused weight slab
                const((8, W3)),                           # packed bias slab
            ],
            out_specs=pl.BlockSpec((batch_tile, T), lambda b: (b, 0)),
        ),
        compiler_params=pltpu.CompilerParams(
            dimension_semantics=("parallel",),            # shards steps across v7x TCs
        ),
    )(ids_col, knobs_col, emb, pe_tiled, w_all, biases)
    return out


def reference_forward(step_types, knobs, params, nhead: int):
    """Plain-JAX reference of the PyTorch AttentionModel.forward (return_attn=False)."""
    B, L = step_types.shape
    V, D = params["emb"].shape
    H = nhead
    dh = D // H
    pe = make_positional_encoding(D, max_len=L)[:L]

    x = params["emb"][step_types]                                         # (B, L, D)
    x = x + knobs[..., None] * params["kw"][None, None, :] + params["kb"]
    x = x + pe[None]

    q = x @ params["Wq"].T + params["bq"]
    k = x @ params["Wk"].T + params["bk"]
    v = x @ params["Wv"].T + params["bv"]
    qh = q.reshape(B, L, H, dh).transpose(0, 2, 1, 3)
    kh = k.reshape(B, L, H, dh).transpose(0, 2, 1, 3)
    vh = v.reshape(B, L, H, dh).transpose(0, 2, 1, 3)
    s = jnp.einsum("bhld,bhmd->bhlm", qh, kh) / math.sqrt(dh)
    p = jax.nn.softmax(s, axis=-1)
    o = jnp.einsum("bhlm,bhmd->bhld", p, vh)
    o = o.transpose(0, 2, 1, 3).reshape(B, L, D)
    attn = o @ params["Wo"].T + params["bo"]

    h1 = jnp.maximum(attn @ params["W1"].T + params["b1"], 0.0)
    y = h1 @ params["W2"].T + params["b2"]
    pooled = y.mean(axis=1)
    return pooled @ params["Wfc"].T + params["bfc"]


if __name__ == "__main__":
    # Small shapes implied by the module: batch=2, seq=8, d_model=32, nhead=4,
    # num_step_types=6, num_targets=3.
    B, L, D, H, T, V = 2, 8, 32, 4, 3, 6

    key = jax.random.PRNGKey(0)
    keys = jax.random.split(key, 20)

    def nrm(k, shape, scale=0.2):
        return scale * jax.random.normal(k, shape, dtype=jnp.float32)

    params = {
        "emb": nrm(keys[0], (V, D), 1.0),
        "kw": nrm(keys[1], (D,)), "kb": nrm(keys[2], (D,)),
        "Wq": nrm(keys[3], (D, D)), "bq": nrm(keys[4], (D,)),
        "Wk": nrm(keys[5], (D, D)), "bk": nrm(keys[6], (D,)),
        "Wv": nrm(keys[7], (D, D)), "bv": nrm(keys[8], (D,)),
        "Wo": nrm(keys[9], (D, D)), "bo": nrm(keys[10], (D,)),
        "W1": nrm(keys[11], (D, D)), "b1": nrm(keys[12], (D,)),
        "W2": nrm(keys[13], (D, D)), "b2": nrm(keys[14], (D,)),
        "Wfc": nrm(keys[15], (T, D)), "bfc": nrm(keys[16], (T,)),
    }

    step_types = jax.random.randint(keys[17], (B, L), 0, V, dtype=jnp.int32)
    knobs = jax.random.normal(keys[18], (B, L), dtype=jnp.float32)

    ref = jax.block_until_ready(reference_forward(step_types, knobs, params, nhead=H))

    # Exact path (f32 MXU operands): strict check against the plain-JAX reference.
    fwd_f32 = jax.jit(functools.partial(attention_model_forward, nhead=H,
                                        mxu_dtype=jnp.float32))
    out_f32 = jax.block_until_ready(fwd_f32(step_types, knobs, params))
    assert out_f32.shape == (B, T), f"bad output shape {out_f32.shape}"
    assert bool(jnp.all(jnp.isfinite(out_f32))), "non-finite output (f32 path)"
    diff_f32 = float(jnp.max(jnp.abs(out_f32 - ref)))
    assert jnp.allclose(out_f32, ref, atol=1e-2, rtol=1e-2), (
        f"f32-path mismatch vs reference, max abs diff = {diff_f32}")

    # Default fast path: bf16 MXU operands, f32 accumulation + f32 softmax math.
    fwd = jax.jit(functools.partial(attention_model_forward, nhead=H))
    out = jax.block_until_ready(fwd(step_types, knobs, params))
    assert out.shape == (B, T), f"bad output shape {out.shape}"
    assert bool(jnp.all(jnp.isfinite(out))), "non-finite output (bf16 path)"
    diff_bf16 = float(jnp.max(jnp.abs(out - ref)))
    # Looser tolerance: bf16 matmul inputs (per perf review) vs f32 reference.
    assert jnp.allclose(out, ref, atol=5e-2, rtol=5e-2), (
        f"bf16-path mismatch vs reference, max abs diff = {diff_bf16}")

    print("KERNEL_OK")
</pallas_src>

<mosaic_0001>
module attributes {stable_mosaic.version = 11 : i64} {
  func.func @_fused_attention_model_kernel(%arg0: i32, %arg1: memref<16x1xi32, #tpu.memory_space<vmem>>, %arg2: memref<16x1xf32, #tpu.memory_space<vmem>>, %arg3: memref<6x32xf32, #tpu.memory_space<vmem>>, %arg4: memref<16x32xf32, #tpu.memory_space<vmem>>, %arg5: memref<32x195xf32, #tpu.memory_space<vmem>>, %arg6: memref<8x96xf32, #tpu.memory_space<vmem>>, %arg7: memref<2x3xf32, #tpu.memory_space<vmem>>) attributes {dimension_semantics = [#tpu.dimension_semantics<parallel>], iteration_bounds = array<i64: 1>, scalar_prefetch = 0 : i64, scratch_operands = 0 : i64, tpu.core_type = #tpu.core_type<tc>, window_params = [{transform_indices = @transform_0, window_bounds = array<i64: 16, 1>}, {transform_indices = @transform_1, window_bounds = array<i64: 16, 1>}, {pipeline_mode = #tpu.pipeline_mode<synchronous>, transform_indices = @transform_2, window_bounds = array<i64: 6, 32>}, {pipeline_mode = #tpu.pipeline_mode<synchronous>, transform_indices = @transform_3, window_bounds = array<i64: 16, 32>}, {pipeline_mode = #tpu.pipeline_mode<synchronous>, transform_indices = @transform_4, window_bounds = array<i64: 32, 195>}, {pipeline_mode = #tpu.pipeline_mode<synchronous>, transform_indices = @transform_5, window_bounds = array<i64: 8, 96>}, {transform_indices = @transform_6, window_bounds = array<i64: 2, 3>}]} {
    %c0 = arith.constant 0 : index
    %c0_0 = arith.constant 0 : index
    %0 = vector.load %arg6[%c0, %c0_0] : memref<8x96xf32, #tpu.memory_space<vmem>>, vector<1x32xf32>
    %c1 = arith.constant 1 : index
    %c0_1 = arith.constant 0 : index
    %1 = vector.load %arg6[%c1, %c0_1] : memref<8x96xf32, #tpu.memory_space<vmem>>, vector<1x32xf32>
    %c2 = arith.constant 2 : index
    %c0_2 = arith.constant 0 : index
    %2 = vector.load %arg6[%c2, %c0_2] : memref<8x96xf32, #tpu.memory_space<vmem>>, vector<1x96xf32>
    %c3 = arith.constant 3 : index
    %c0_3 = arith.constant 0 : index
    %3 = vector.load %arg6[%c3, %c0_3] : memref<8x96xf32, #tpu.memory_space<vmem>>, vector<1x32xf32>
    %c4 = arith.constant 4 : index
    %c0_4 = arith.constant 0 : index
    %4 = vector.load %arg6[%c4, %c0_4] : memref<8x96xf32, #tpu.memory_space<vmem>>, vector<1x32xf32>
    %c5 = arith.constant 5 : index
    %c0_5 = arith.constant 0 : index
    %5 = vector.load %arg6[%c5, %c0_5] : memref<8x96xf32, #tpu.memory_space<vmem>>, vector<1x32xf32>
    %c6 = arith.constant 6 : index
    %c0_6 = arith.constant 0 : index
    %6 = vector.load %arg6[%c6, %c0_6] : memref<8x96xf32, #tpu.memory_space<vmem>>, vector<1x3xf32>
    %c0_7 = arith.constant 0 : index
    %c0_8 = arith.constant 0 : index
    %7 = vector.load %arg1[%c0_7, %c0_8] : memref<16x1xi32, #tpu.memory_space<vmem>>, vector<16x1xi32>
    %8 = tpu.iota {dimensions = array<i32: 1>} : vector<16x6xi32>
    %9 = vector.broadcast %7 : vector<16x1xi32> to vector<16x6xi32>
    %10 = arith.cmpi eq, %8, %9 : vector<16x6xi32>
    %11 = arith.extui %10 : vector<16x6xi1> to vector<16x6xi32>
    %12 = arith.sitofp %11 : vector<16x6xi32> to vector<16x6xf32>
    %c0_9 = arith.constant 0 : index
    %c0_10 = arith.constant 0 : index
    %13 = vector.load %arg3[%c0_9, %c0_10] : memref<6x32xf32, #tpu.memory_space<vmem>>, vector<6x32xf32>
    %cst = arith.constant dense<0.000000e+00> : vector<16x32xf32>
    %14 = tpu.matmul %12, %13, %cst {dimension_numbers = #tpu.dot_dimension_numbers<[1], [0], [0], [1], [0, 0, 1, 1], [], []>} : vector<16x6xf32>, vector<6x32xf32>, vector<16x32xf32> -> vector<16x32xf32>
    %c0_11 = arith.constant 0 : index
    %c0_12 = arith.constant 0 : index
    %15 = vector.load %arg2[%c0_11, %c0_12] : memref<16x1xf32, #tpu.memory_space<vmem>>, vector<16x1xf32>
    %16 = vector.broadcast %15 : vector<16x1xf32> to vector<16x32xf32>
    %17 = vector.broadcast %0 : vector<1x32xf32> to vector<16x32xf32>
    %18 = arith.mulf %16, %17 : vector<16x32xf32>
    %19 = arith.addf %14, %18 : vector<16x32xf32>
    %20 = vector.broadcast %1 : vector<1x32xf32> to vector<16x32xf32>
    %21 = arith.addf %19, %20 : vector<16x32xf32>
    %c0_13 = arith.constant 0 : index
    %c0_14 = arith.constant 0 : index
    %22 = vector.load %arg4[%c0_13, %c0_14] : memref<16x32xf32, #tpu.memory_space<vmem>>, vector<16x32xf32>
    %23 = arith.addf %21, %22 : vector<16x32xf32>
    %c0_15 = arith.constant 0 : index
    %c0_16 = arith.constant 0 : index
    %24 = vector.load %arg5[%c0_15, %c0_16] : memref<32x195xf32, #tpu.memory_space<vmem>>, vector<32x96xf32>
    %cst_17 = arith.constant dense<0.000000e+00> : vector<16x96xf32>
    %25 = tpu.matmul %23, %24, %cst_17 {dimension_numbers = #tpu.dot_dimension_numbers<[1], [0], [0], [1], [0, 0, 1, 1], [], []>} : vector<16x32xf32>, vector<32x96xf32>, vector<16x96xf32> -> vector<16x96xf32>
    %26 = vector.broadcast %2 : vector<1x96xf32> to vector<16x96xf32>
    %27 = arith.addf %25, %26 : vector<16x96xf32>
    %28 = vector.shape_cast %27 : vector<16x96xf32> to vector<2x8x96xf32>
    %29 = vector.extract_strided_slice %28 {offsets = [0, 0, 0], sizes = [2, 8, 8], strides = [1, 1, 1]} : vector<2x8x96xf32> to vector<2x8x8xf32>
    %cst_18 = arith.constant 0.353553385 : f32
    %30 = vector.broadcast %cst_18 : f32 to vector<2x8x8xf32>
    %31 = arith.mulf %29, %30 : vector<2x8x8xf32>
    %32 = vector.extract_strided_slice %28 {offsets = [0, 0, 32], sizes = [2, 8, 8], strides = [1, 1, 1]} : vector<2x8x96xf32> to vector<2x8x8xf32>
    %33 = vector.extract_strided_slice %28 {offsets = [0, 0, 64], sizes = [2, 8, 8], strides = [1, 1, 1]} : vector<2x8x96xf32> to vector<2x8x8xf32>
    "tpu.trace_start"() <{level = 10 : i32, message = "bqd,bkd->bqk"}> : () -> ()
    %cst_19 = arith.constant dense<0.000000e+00> : vector<2x8x8xf32>
    %34 = tpu.matmul %31, %32, %cst_19 {dimension_numbers = #tpu.dot_dimension_numbers<[2], [2], [1], [1], [0, 0, 0, 1, 1, 1], [0], [0]>} : vector<2x8x8xf32>, vector<2x8x8xf32>, vector<2x8x8xf32> -> vector<2x8x8xf32>
    "tpu.trace_stop"() : () -> ()
    %cst_20 = arith.constant dense<0xFF800000> : vector<2x8xf32>
    %35 = vector.multi_reduction <maximumf>, %34, %cst_20 [2] : vector<2x8x8xf32> to vector<2x8xf32>
    %36 = vector.shape_cast %35 : vector<2x8xf32> to vector<2x8x1xf32>
    %37 = vector.broadcast %36 : vector<2x8x1xf32> to vector<2x8x8xf32>
    %38 = arith.subf %34, %37 : vector<2x8x8xf32>
    %39 = math.exp %38 : vector<2x8x8xf32>
    %cst_21 = arith.constant dense<0.000000e+00> : vector<2x8xf32>
    %40 = vector.multi_reduction <add>, %39, %cst_21 [2] : vector<2x8x8xf32> to vector<2x8xf32>
    %41 = vector.shape_cast %40 : vector<2x8xf32> to vector<2x8x1xf32>
    %42 = tpu.reciprocal %41 {approx = true} : vector<2x8x1xf32> -> vector<2x8x1xf32>
    %43 = vector.broadcast %42 : vector<2x8x1xf32> to vector<2x8x8xf32>
    %44 = arith.mulf %39, %43 : vector<2x8x8xf32>
    "tpu.trace_start"() <{level = 10 : i32, message = "bqk,bkd->bqd"}> : () -> ()
    %cst_22 = arith.constant dense<0.000000e+00> : vector<2x8x8xf32>
    %45 = tpu.matmul %44, %33, %cst_22 {dimension_numbers = #tpu.dot_dimension_numbers<[2], [1], [1], [2], [0, 0, 0, 1, 1, 2], [0], [0]>} : vector<2x8x8xf32>, vector<2x8x8xf32>, vector<2x8x8xf32> -> vector<2x8x8xf32>
    "tpu.trace_stop"() : () -> ()
    %46 = vector.extract_strided_slice %28 {offsets = [0, 0, 8], sizes = [2, 8, 8], strides = [1, 1, 1]} : vector<2x8x96xf32> to vector<2x8x8xf32>
    %cst_23 = arith.constant 0.353553385 : f32
    %47 = vector.broadcast %cst_23 : f32 to vector<2x8x8xf32>
    %48 = arith.mulf %46, %47 : vector<2x8x8xf32>
    %49 = vector.extract_strided_slice %28 {offsets = [0, 0, 40], sizes = [2, 8, 8], strides = [1, 1, 1]} : vector<2x8x96xf32> to vector<2x8x8xf32>
    %50 = vector.extract_strided_slice %28 {offsets = [0, 0, 72], sizes = [2, 8, 8], strides = [1, 1, 1]} : vector<2x8x96xf32> to vector<2x8x8xf32>
    "tpu.trace_start"() <{level = 10 : i32, message = "bqd,bkd->bqk"}> : () -> ()
    %cst_24 = arith.constant dense<0.000000e+00> : vector<2x8x8xf32>
    %51 = tpu.matmul %48, %49, %cst_24 {dimension_numbers = #tpu.dot_dimension_numbers<[2], [2], [1], [1], [0, 0, 0, 1, 1, 1], [0], [0]>} : vector<2x8x8xf32>, vector<2x8x8xf32>, vector<2x8x8xf32> -> vector<2x8x8xf32>
    "tpu.trace_stop"() : () -> ()
    %cst_25 = arith.constant dense<0xFF800000> : vector<2x8xf32>
    %52 = vector.multi_reduction <maximumf>, %51, %cst_25 [2] : vector<2x8x8xf32> to vector<2x8xf32>
    %53 = vector.shape_cast %52 : vector<2x8xf32> to vector<2x8x1xf32>
    %54 = vector.broadcast %53 : vector<2x8x1xf32> to vector<2x8x8xf32>
    %55 = arith.subf %51, %54 : vector<2x8x8xf32>
    %56 = math.exp %55 : vector<2x8x8xf32>
    %cst_26 = arith.constant dense<0.000000e+00> : vector<2x8xf32>
    %57 = vector.multi_reduction <add>, %56, %cst_26 [2] : vector<2x8x8xf32> to vector<2x8xf32>
    %58 = vector.shape_cast %57 : vector<2x8xf32> to vector<2x8x1xf32>
    %59 = tpu.reciprocal %58 {approx = true} : vector<2x8x1xf32> -> vector<2x8x1xf32>
    %60 = vector.broadcast %59 : vector<2x8x1xf32> to vector<2x8x8xf32>
    %61 = arith.mulf %56, %60 : vector<2x8x8xf32>
    "tpu.trace_start"() <{level = 10 : i32, message = "bqk,bkd->bqd"}> : () -> ()
    %cst_27 = arith.constant dense<0.000000e+00> : vector<2x8x8xf32>
    %62 = tpu.matmul %61, %50, %cst_27 {dimension_numbers = #tpu.dot_dimension_numbers<[2], [1], [1], [2], [0, 0, 0, 1, 1, 2], [0], [0]>} : vector<2x8x8xf32>, vector<2x8x8xf32>, vector<2x8x8xf32> -> vector<2x8x8xf32>
    "tpu.trace_stop"() : () -> ()
    %63 = vector.extract_strided_slice %28 {offsets = [0, 0, 16], sizes = [2, 8, 8], strides = [1, 1, 1]} : vector<2x8x96xf32> to vector<2x8x8xf32>
    %cst_28 = arith.constant 0.353553385 : f32
    %64 = vector.broadcast %cst_28 : f32 to vector<2x8x8xf32>
    %65 = arith.mulf %63, %64 : vector<2x8x8xf32>
    %66 = vector.extract_strided_slice %28 {offsets = [0, 0, 48], sizes = [2, 8, 8], strides = [1, 1, 1]} : vector<2x8x96xf32> to vector<2x8x8xf32>
    %67 = vector.extract_strided_slice %28 {offsets = [0, 0, 80], sizes = [2, 8, 8], strides = [1, 1, 1]} : vector<2x8x96xf32> to vector<2x8x8xf32>
    "tpu.trace_start"() <{level = 10 : i32, message = "bqd,bkd->bqk"}> : () -> ()
    %cst_29 = arith.constant dense<0.000000e+00> : vector<2x8x8xf32>
    %68 = tpu.matmul %65, %66, %cst_29 {dimension_numbers = #tpu.dot_dimension_numbers<[2], [2], [1], [1], [0, 0, 0, 1, 1, 1], [0], [0]>} : vector<2x8x8xf32>, vector<2x8x8xf32>, vector<2x8x8xf32> -> vector<2x8x8xf32>
    "tpu.trace_stop"() : () -> ()
    %cst_30 = arith.constant dense<0xFF800000> : vector<2x8xf32>
    %69 = vector.multi_reduction <maximumf>, %68, %cst_30 [2] : vector<2x8x8xf32> to vector<2x8xf32>
    %70 = vector.shape_cast %69 : vector<2x8xf32> to vector<2x8x1xf32>
    %71 = vector.broadcast %70 : vector<2x8x1xf32> to vector<2x8x8xf32>
    %72 = arith.subf %68, %71 : vector<2x8x8xf32>
    %73 = math.exp %72 : vector<2x8x8xf32>
    %cst_31 = arith.constant dense<0.000000e+00> : vector<2x8xf32>
    %74 = vector.multi_reduction <add>, %73, %cst_31 [2] : vector<2x8x8xf32> to vector<2x8xf32>
    %75 = vector.shape_cast %74 : vector<2x8xf32> to vector<2x8x1xf32>
    %76 = tpu.reciprocal %75 {approx = true} : vector<2x8x1xf32> -> vector<2x8x1xf32>
    %77 = vector.broadcast %76 : vector<2x8x1xf32> to vector<2x8x8xf32>
    %78 = arith.mulf %73, %77 : vector<2x8x8xf32>
    "tpu.trace_start"() <{level = 10 : i32, message = "bqk,bkd->bqd"}> : () -> ()
    %cst_32 = arith.constant dense<0.000000e+00> : vector<2x8x8xf32>
    %79 = tpu.matmul %78, %67, %cst_32 {dimension_numbers = #tpu.dot_dimension_numbers<[2], [1], [1], [2], [0, 0, 0, 1, 1, 2], [0], [0]>} : vector<2x8x8xf32>, vector<2x8x8xf32>, vector<2x8x8xf32> -> vector<2x8x8xf32>
    "tpu.trace_stop"() : () -> ()
    %80 = vector.extract_strided_slice %28 {offsets = [0, 0, 24], sizes = [2, 8, 8], strides = [1, 1, 1]} : vector<2x8x96xf32> to vector<2x8x8xf32>
    %cst_33 = arith.constant 0.353553385 : f32
    %81 = vector.broadcast %cst_33 : f32 to vector<2x8x8xf32>
    %82 = arith.mulf %80, %81 : vector<2x8x8xf32>
    %83 = vector.extract_strided_slice %28 {offsets = [0, 0, 56], sizes = [2, 8, 8], strides = [1, 1, 1]} : vector<2x8x96xf32> to vector<2x8x8xf32>
    %84 = vector.extract_strided_slice %28 {offsets = [0, 0, 88], sizes = [2, 8, 8], strides = [1, 1, 1]} : vector<2x8x96xf32> to vector<2x8x8xf32>
    "tpu.trace_start"() <{level = 10 : i32, message = "bqd,bkd->bqk"}> : () -> ()
    %cst_34 = arith.constant dense<0.000000e+00> : vector<2x8x8xf32>
    %85 = tpu.matmul %82, %83, %cst_34 {dimension_numbers = #tpu.dot_dimension_numbers<[2], [2], [1], [1], [0, 0, 0, 1, 1, 1], [0], [0]>} : vector<2x8x8xf32>, vector<2x8x8xf32>, vector<2x8x8xf32> -> vector<2x8x8xf32>
    "tpu.trace_stop"() : () -> ()
    %cst_35 = arith.constant dense<0xFF800000> : vector<2x8xf32>
    %86 = vector.multi_reduction <maximumf>, %85, %cst_35 [2] : vector<2x8x8xf32> to vector<2x8xf32>
    %87 = vector.shape_cast %86 : vector<2x8xf32> to vector<2x8x1xf32>
    %88 = vector.broadcast %87 : vector<2x8x1xf32> to vector<2x8x8xf32>
    %89 = arith.subf %85, %88 : vector<2x8x8xf32>
    %90 = math.exp %89 : vector<2x8x8xf32>
    %cst_36 = arith.constant dense<0.000000e+00> : vector<2x8xf32>
    %91 = vector.multi_reduction <add>, %90, %cst_36 [2] : vector<2x8x8xf32> to vector<2x8xf32>
    %92 = vector.shape_cast %91 : vector<2x8xf32> to vector<2x8x1xf32>
    %93 = tpu.reciprocal %92 {approx = true} : vector<2x8x1xf32> -> vector<2x8x1xf32>
    %94 = vector.broadcast %93 : vector<2x8x1xf32> to vector<2x8x8xf32>
    %95 = arith.mulf %90, %94 : vector<2x8x8xf32>
    "tpu.trace_start"() <{level = 10 : i32, message = "bqk,bkd->bqd"}> : () -> ()
    %cst_37 = arith.constant dense<0.000000e+00> : vector<2x8x8xf32>
    %96 = tpu.matmul %95, %84, %cst_37 {dimension_numbers = #tpu.dot_dimension_numbers<[2], [1], [1], [2], [0, 0, 0, 1, 1, 2], [0], [0]>} : vector<2x8x8xf32>, vector<2x8x8xf32>, vector<2x8x8xf32> -> vector<2x8x8xf32>
    "tpu.trace_stop"() : () -> ()
    %97 = tpu.concatenate %45, %62, %79, %96 in 2 : vector<2x8x8xf32>, vector<2x8x8xf32>, vector<2x8x8xf32>, vector<2x8x8xf32> -> vector<2x8x32xf32>
    %98 = vector.shape_cast %97 : vector<2x8x32xf32> to vector<16x32xf32>
    %c0_38 = arith.constant 0 : index
    %c96 = arith.constant 96 : index
    %99 = vector.load %arg5[%c0_38, %c96] : memref<32x195xf32, #tpu.memory_space<vmem>>, vector<32x32xf32>
    %cst_39 = arith.constant dense<0.000000e+00> : vector<16x32xf32>
    %100 = tpu.matmul %98, %99, %cst_39 {dimension_numbers = #tpu.dot_dimension_numbers<[1], [0], [0], [1], [0, 0, 1, 1], [], []>} : vector<16x32xf32>, vector<32x32xf32>, vector<16x32xf32> -> vector<16x32xf32>
    %101 = vector.broadcast %3 : vector<1x32xf32> to vector<16x32xf32>
    %102 = arith.addf %100, %101 : vector<16x32xf32>
    %c0_40 = arith.constant 0 : index
    %c128 = arith.constant 128 : index
    %103 = vector.load %arg5[%c0_40, %c128] : memref<32x195xf32, #tpu.memory_space<vmem>>, vector<32x32xf32>
    %cst_41 = arith.constant dense<0.000000e+00> : vector<16x32xf32>
    %104 = tpu.matmul %102, %103, %cst_41 {dimension_numbers = #tpu.dot_dimension_numbers<[1], [0], [0], [1], [0, 0, 1, 1], [], []>} : vector<16x32xf32>, vector<32x32xf32>, vector<16x32xf32> -> vector<16x32xf32>
    %105 = vector.broadcast %4 : vector<1x32xf32> to vector<16x32xf32>
    %106 = arith.addf %104, %105 : vector<16x32xf32>
    %cst_42 = arith.constant 0.000000e+00 : f32
    %107 = vector.broadcast %cst_42 : f32 to vector<16x32xf32>
    %108 = arith.maximumf %106, %107 : vector<16x32xf32>
    %c0_43 = arith.constant 0 : index
    %c160 = arith.constant 160 : index
    %109 = vector.load %arg5[%c0_43, %c160] : memref<32x195xf32, #tpu.memory_space<vmem>>, vector<32x32xf32>
    %cst_44 = arith.constant dense<0.000000e+00> : vector<16x32xf32>
    %110 = tpu.matmul %108, %109, %cst_44 {dimension_numbers = #tpu.dot_dimension_numbers<[1], [0], [0], [1], [0, 0, 1, 1], [], []>} : vector<16x32xf32>, vector<32x32xf32>, vector<16x32xf32> -> vector<16x32xf32>
    %111 = vector.broadcast %5 : vector<1x32xf32> to vector<16x32xf32>
    %112 = arith.addf %110, %111 : vector<16x32xf32>
    %113 = vector.shape_cast %112 : vector<16x32xf32> to vector<2x8x32xf32>
    %cst_45 = arith.constant dense<0.000000e+00> : vector<2x32xf32>
    %114 = vector.multi_reduction <add>, %113, %cst_45 [1] : vector<2x8x32xf32> to vector<2x32xf32>
    %cst_46 = arith.constant 8.000000e+00 : f32
    %115 = vector.broadcast %cst_46 : f32 to vector<2x32xf32>
    %116 = arith.divf %114, %115 : vector<2x32xf32>
    %c0_47 = arith.constant 0 : index
    %c192 = arith.constant 192 : index
    %117 = vector.load %arg5[%c0_47, %c192] : memref<32x195xf32, #tpu.memory_space<vmem>>, vector<32x3xf32>
    %cst_48 = arith.constant dense<0.000000e+00> : vector<2x3xf32>
    %118 = tpu.matmul %116, %117, %cst_48 {dimension_numbers = #tpu.dot_dimension_numbers<[1], [0], [0], [1], [0, 0, 1, 1], [], []>} : vector<2x32xf32>, vector<32x3xf32>, vector<2x3xf32> -> vector<2x3xf32>
    %119 = vector.broadcast %6 : vector<1x3xf32> to vector<2x3xf32>
    %120 = arith.addf %118, %119 : vector<2x3xf32>
    %c0_49 = arith.constant 0 : index
    %c0_50 = arith.constant 0 : index
    %121 = vector.load %arg7[%c0_49, %c0_50] : memref<2x3xf32, #tpu.memory_space<vmem>>, vector<2x3xf32>
    tpu.vector_store %arg7[%c0_49, %c0_50], %120 {strides = array<i32>} : memref<2x3xf32, #tpu.memory_space<vmem>>, vector<2x3xf32>,
    return
  }
  func.func @transform_0(%arg0: i32) -> (i32, i32) {
    %c0_i32 = arith.constant 0 : i32
    %c0_i32_0 = arith.constant 0 : i32
    return %arg0, %c0_i32 : i32, i32
  }
  func.func @transform_1(%arg0: i32) -> (i32, i32) {
    %c0_i32 = arith.constant 0 : i32
    %c0_i32_0 = arith.constant 0 : i32
    return %arg0, %c0_i32 : i32, i32
  }
  func.func @transform_2(%arg0: i32) -> (i32, i32) {
    %c0_i32 = arith.constant 0 : i32
    %c0_i32_0 = arith.constant 0 : i32
    %c0_i32_1 = arith.constant 0 : i32
    return %c0_i32, %c0_i32_0 : i32, i32
  }
  func.func @transform_3(%arg0: i32) -> (i32, i32) {
    %c0_i32 = arith.constant 0 : i32
    %c0_i32_0 = arith.constant 0 : i32
    %c0_i32_1 = arith.constant 0 : i32
    return %c0_i32, %c0_i32_0 : i32, i32
  }
  func.func @transform_4(%arg0: i32) -> (i32, i32) {
    %c0_i32 = arith.constant 0 : i32
    %c0_i32_0 = arith.constant 0 : i32
    %c0_i32_1 = arith.constant 0 : i32
    return %c0_i32, %c0_i32_0 : i32, i32
  }
  func.func @transform_5(%arg0: i32) -> (i32, i32) {
    %c0_i32 = arith.constant 0 : i32
    %c0_i32_0 = arith.constant 0 : i32
    %c0_i32_1 = arith.constant 0 : i32
    return %c0_i32, %c0_i32_0 : i32, i32
  }
  func.func @transform_6(%arg0: i32) -> (i32, i32) {
    %c0_i32 = arith.constant 0 : i32
    %c0_i32_0 = arith.constant 0 : i32
    return %arg0, %c0_i32 : i32, i32
  }
}

</mosaic_0001>

<llo_original>
// kernel: attention_model_forward.1
$region0: #{attention_model_forward.1}
  #allocation0 [shape = 'u32[]', space=smem, size = 0x4, offset = 0x4, fixed_abs, tag = 'smem constant byte address 0x4 - core index']
  #allocation1 [shape = 'u32[144,128]{1,0:T(1,128)}', space=vmem, size = 0x12000, scoped, tag = 'internal scratch']
  %s0 = inlined_call_operand.vmem [shape: s32[16,1], index: 0, kind: input, shape index: {}]
  %s1 = inlined_call_operand.vmem [shape: f32[16,1], index: 1, kind: input, shape index: {}]
  %s2 = inlined_call_operand.vmem [shape: f32[6,32], index: 2, kind: input, shape index: {}]
  %s3 = inlined_call_operand.vmem [shape: f32[16,32], index: 3, kind: input, shape index: {}]
  %s4 = inlined_call_operand.vmem [shape: f32[32,195], index: 4, kind: input, shape index: {}]
  %s5 = inlined_call_operand.vmem [shape: f32[8,96], index: 5, kind: input, shape index: {}]
  %s6 = inlined_call_operand.hbm [shape: f32[2,3], index: 6, kind: output, shape index: {}]
  %s7 = sld [smem:[#allocation0]]
  $region34: #{attention_model_forward.1} parent=0
    _
  %s9 = ssub.s32 1, %s7
  %s10 = scalar_select 0, %s9, %s7
  $region1: #{attention_model_forward.1} parent=0
    #allocation2 [shape = 'u8[1024]{0}', space=vmem, size = 0x400, scoped, tag = 'output window, operand 0, single buffered']
    #allocation3 [shape = 's32[1]{0}', space=sflag, size = 0x4, scoped, tag = 'scoped memory for attention_model_forward.1']
    %11 = vsyncpa [#allocation3], 0
    // Predicated region
    $region2: #{attention_model_forward.1} parent=1 // pred_check
      _
    $region3: #{attention_model_forward.1} parent=1 // pred_check_branch
      %13 = sbr.rel (0) target = $region5
    $region4: #{attention_model_forward.1} parent=1 // pred_region
      _
    $region5: #{attention_model_forward.1} parent=1 // pred_fallthru
      _
    // Predicated region
    $region6: #{attention_model_forward.1} parent=1 // pred_check
      _
    $region7: #{attention_model_forward.1} parent=1 // pred_check_branch
      %15 = sbr.rel (0) target = $region9
    $region8: #{attention_model_forward.1} parent=1 // pred_region
      _
    $region9: #{attention_model_forward.1} parent=1 // pred_fallthru
      _
    // Predicated region
    $region10: #{attention_model_forward.1} parent=1 // pred_check
      _
    $region11: #{attention_model_forward.1} parent=1 // pred_check_branch
      %17 = sbr.rel (0) target = $region13
    $region12: #{attention_model_forward.1} parent=1 // pred_region
      _
    $region13: #{attention_model_forward.1} parent=1 // pred_fallthru
      _
    // Predicated region
    $region14: #{attention_model_forward.1} parent=1 // pred_check
      _
    $region15: #{attention_model_forward.1} parent=1 // pred_check_branch
      %19 = sbr.rel (0) target = $region17
    $region16: #{attention_model_forward.1} parent=1 // pred_region
      _
    $region17: #{attention_model_forward.1} parent=1 // pred_fallthru
      _
    // Predicated region
    $region18: #{attention_model_forward.1} parent=1 // pred_check
      _
    $region19: #{attention_model_forward.1} parent=1 // pred_check_branch
      %21 = sbr.rel (0) target = $region21
    $region20: #{attention_model_forward.1} parent=1 // pred_region
      _
    $region21: #{attention_model_forward.1} parent=1 // pred_fallthru
      _
    // Predicated region
    $region22: #{attention_model_forward.1} parent=1 // pred_check
      _
    $region23: #{attention_model_forward.1} parent=1 // pred_check_branch
      %23 = sbr.rel (0) target = $region25
    $region24: #{attention_model_forward.1} parent=1 // pred_region
      _
    $region25: #{attention_model_forward.1} parent=1 // pred_fallthru
      _
    %v24 = vld [vmem:[%s5] sm:$0x1]
    %v25 = vld [vmem:[%s5 + $0x1] sm:$0x1]
    %v26 = vld [vmem:[%s5 + $0x2] sm:$0x1]
    %v27 = vld [vmem:[%s5 + $0x3] sm:$0x1]
    %v28 = vld [vmem:[%s5 + $0x4] sm:$0x1]
    %v29 = vld [vmem:[%s5 + $0x5] sm:$0x1]
    %v30 = vld [vmem:[%s5 + $0x6] sm:$0x1]
    %v31 = vld [vmem:[%s0] sm:$0xff]
    %v32 = vld [vmem:[%s0 + $0x8] sm:$0xff]
    %v33 = vlaneseq
    %v34 = vand.u32 %v33, 127
    %35 = vset.pattern.permute.xlu0 0
    %36 = vperm.xlu0 %35, %v31
    %v37 = vpop.permute.xlu0 %36
    %38 = vset.pattern.permute.xlu0 0
    %39 = vperm.xlu0 %38, %v32
    %v40 = vpop.permute.xlu0 %39
    %vm41 = vcmp.eq.s32.totalorder %v34, %v37
    %vm42 = vcmp.eq.s32.totalorder %v34, %v40
    %v43 = vsel %vm41, 1, 0
    %v44 = vsel %vm42, 1, 0
    %v45 = vcvt.s32.f32 %v43
    %v46 = vcvt.s32.f32 %v44
    %v47 = vld [vmem:[%s2] sm:$0x3f]
    %v48 = vld [vmem:[%s1] sm:$0xff]
    %v49 = vld [vmem:[%s1 + $0x8] sm:$0xff]
    %51 = vset.pattern.permute.xlu0 0
    %52 = vperm.xlu0 %51, %v48
    %v53 = vpop.permute.xlu0 %52
    %56 = vset.pattern.permute.xlu0 0
    %57 = vperm.xlu0 %56, %v49
    %v58 = vpop.permute.xlu0 %57
    %v60 = vlaneseq
    %v61 = vshrl.u32 %v60, 7
    %v62 = vsub.s32 0, %v61
    %v63 = vrot.slane %v24, %v62
    %v64 = vmul.f32 %v53, %v63
    %v65 = vmul.f32 %v58, %v63
    %vm66 = vcmask 48128
    %v68 = vsel %vm66, %v45, 0
    %v71 = vsel %vm66, %v46, 0
    %vm73 = vcmask 1045504
    %v75 = vsel %vm73, %v47, 0
    %77 = vmatprep.subr.mxu0 0.0
    %78 = vmatpush1.msra.mxu0 0.0
    %79 = vmatprep.subr.mxu0 0.0
    %80 = vmatpush1.msra.mxu0 0.0
    %81 = vmatprep.subr.mxu0 0.0
    %82 = vmatpush1.msra.mxu0 0.0
    %83 = vmatprep.subr.mxu0 0.0
    %84 = vmatpush1.msra.mxu0 0.0
    %85 = vmatprep.subr.mxu0 0.0
    %86 = vmatpush1.msra.mxu0 0.0
    %87 = vmatprep.subr.mxu0 0.0
    %88 = vmatpush1.msra.mxu0 0.0
    %89 = vmatprep.subr.mxu0 0.0
    %90 = vmatpush1.msra.mxu0 0.0
    %91 = vmatprep.subr.mxu0 0.0
    %92 = vmatpush1.msra.mxu0 0.0
    %93 = vmatprep.subr.mxu0 0.0
    %94 = vmatpush1.msra.mxu0 0.0
    %95 = vmatprep.subr.mxu0 0.0
    %96 = vmatpush1.msra.mxu0 0.0
    %97 = vmatprep.subr.mxu0 0.0
    %98 = vmatpush1.msra.mxu0 0.0
    %99 = vmatprep.subr.mxu0 0.0
    %100 = vmatpush1.msra.mxu0 0.0
    %101 = vmatprep.subr.mxu0 0.0
    %102 = vmatpush1.msra.mxu0 0.0
    %103 = vmatprep.subr.mxu0 0.0
    %104 = vmatpush1.msra.mxu0 0.0
    %105 = vmatprep.subr.mxu0 0.0
    %106 = vmatpush1.msra.mxu0 0.0
    %107 = vmatprep.subr.mxu0 0.0
    %108 = vmatpush1.msra.mxu0 %v75
    %109 = vmatprep.subr.mxu0 0.0
    %110 = vmatpush2.msra.mxu0 0.0
    %111 = vmatprep.subr.mxu0 0.0
    %112 = vmatpush2.msra.mxu0 0.0
    %113 = vmatprep.subr.mxu0 0.0
    %114 = vmatpush2.msra.mxu0 0.0
    %115 = vmatprep.subr.mxu0 0.0
    %116 = vmatpush2.msra.mxu0 0.0
    %117 = vmatprep.subr.mxu0 0.0
    %118 = vmatpush2.msra.mxu0 0.0
    %119 = vmatprep.subr.mxu0 0.0
    %120 = vmatpush2.msra.mxu0 0.0
    %121 = vmatprep.subr.mxu0 0.0
    %122 = vmatpush2.msra.mxu0 0.0
    %123 = vmatprep.subr.mxu0 0.0
    %124 = vmatpush2.msra.mxu0 0.0
    %125 = vmatprep.subr.mxu0 0.0
    %126 = vmatpush2.msra.mxu0 0.0
    %127 = vmatprep.subr.mxu0 0.0
    %128 = vmatpush2.msra.mxu0 0.0
    %129 = vmatprep.subr.mxu0 0.0
    %130 = vmatpush2.msra.mxu0 0.0
    %131 = vmatprep.subr.mxu0 0.0
    %132 = vmatpush2.msra.mxu0 0.0
    %133 = vmatprep.subr.mxu0 0.0
    %134 = vmatpush2.msra.mxu0 0.0
    %135 = vmatprep.subr.mxu0 0.0
    %136 = vmatpush2.msra.mxu0 0.0
    %137 = vmatprep.subr.mxu0 0.0
    %138 = vmatpush2.msra.mxu0 0.0
    %139 = vmatprep.subr.mxu0 0.0
    %140 = vmatpush2.msra.mxu0 0.0
    %141 = vmatprep.mubr.f32.mxu0 0.0
    %142 = vmatmul.mubr.f32.gmra.mxu0 %v68
    %v143 = vpop.f32.mrf.mxu0
    %v144 = vadd.f32 %v64, %v143
    %v145 = vpop.f32.mrf.mxu0
    %146 = vmatprep.mubr.f32.mxu0 0.0
    %147 = vmatmul.mubr.f32.gmra.mxu0 %v71
    %v148 = vpop.f32.mrf.mxu0
    %v149 = vadd.f32 %v65, %v148
    %v150 = vpop.f32.mrf.mxu0
    %151 = vdwg.mxu0
    %v152 = vlaneseq
    %v153 = vshrl.u32 %v152, 7
    %v154 = vsub.s32 0, %v153
    %v155 = vrot.slane %v25, %v154
    %v156 = vadd.f32 %v144, %v155
    %v157 = vadd.f32 %v149, %v155
    %v158 = vld [vmem:[%s3] sm:$0xff]
    %v159 = vld [vmem:[%s3 + $0x8] sm:$0xff]
    %v160 = vadd.f32 %v156, %v158
    %v161 = vadd.f32 %v157, %v159
    %v162 = vld [vmem:[%s4] sm:$0xff]
    %v163 = vld [vmem:[%s4 + $0x10] sm:$0xff]
    %v164 = vld [vmem:[%s4 + $0x20] sm:$0xff]
    %v165 = vld [vmem:[%s4 + $0x30] sm:$0xff]
    %v166 = vlaneseq
    %v167 = vshrl.u32 %v166, 7
    %v168 = vsub.s32 0, %v167
    %v169 = vrot.slane %v26, %v168
    %vm170 = vcmask 261120
    %v172 = vsel %vm170, %v160, 0
    %v175 = vsel %vm170, %v161, 0
    %177 = vmatprep.subr.mxu0 0.0
    %178 = vmatpush1.msra.mxu0 0.0
    %179 = vmatprep.subr.mxu0 0.0
    %180 = vmatpush1.msra.mxu0 0.0
    %181 = vmatprep.subr.mxu0 0.0
    %182 = vmatpush1.msra.mxu0 0.0
    %183 = vmatprep.subr.mxu0 0.0
    %184 = vmatpush1.msra.mxu0 0.0
    %185 = vmatprep.subr.mxu0 0.0
    %186 = vmatpush1.msra.mxu0 0.0
    %187 = vmatprep.subr.mxu0 0.0
    %188 = vmatpush1.msra.mxu0 0.0
    %189 = vmatprep.subr.mxu0 0.0
    %190 = vmatpush1.msra.mxu0 0.0
    %191 = vmatprep.subr.mxu0 0.0
    %192 = vmatpush1.msra.mxu0 0.0
    %193 = vmatprep.subr.mxu0 0.0
    %194 = vmatpush1.msra.mxu0 0.0
    %195 = vmatprep.subr.mxu0 0.0
    %196 = vmatpush1.msra.mxu0 0.0
    %197 = vmatprep.subr.mxu0 0.0
    %198 = vmatpush1.msra.mxu0 0.0
    %199 = vmatprep.subr.mxu0 0.0
    %200 = vmatpush1.msra.mxu0 0.0
    %201 = vmatprep.subr.mxu0 0.0
    %202 = vmatpush1.msra.mxu0 %v165
    %203 = vmatprep.subr.mxu0 0.0
    %204 = vmatpush1.msra.mxu0 %v164
    %205 = vmatprep.subr.mxu0 0.0
    %206 = vmatpush1.msra.mxu0 %v163
    %207 = vmatprep.subr.mxu0 0.0
    %208 = vmatpush1.msra.mxu0 %v162
    %209 = vmatprep.subr.mxu0 0.0
    %210 = vmatpush2.msra.mxu0 0.0
    %211 = vmatprep.subr.mxu0 0.0
    %212 = vmatpush2.msra.mxu0 0.0
    %213 = vmatprep.subr.mxu0 0.0
    %214 = vmatpush2.msra.mxu0 0.0
    %215 = vmatprep.subr.mxu0 0.0
    %216 = vmatpush2.msra.mxu0 0.0
    %217 = vmatprep.subr.mxu0 0.0
    %218 = vmatpush2.msra.mxu0 0.0
    %219 = vmatprep.subr.mxu0 0.0
    %220 = vmatpush2.msra.mxu0 0.0
    %221 = vmatprep.subr.mxu0 0.0
    %222 = vmatpush2.msra.mxu0 0.0
    %223 = vmatprep.subr.mxu0 0.0
    %224 = vmatpush2.msra.mxu0 0.0
    %225 = vmatprep.subr.mxu0 0.0
    %226 = vmatpush2.msra.mxu0 0.0
    %227 = vmatprep.subr.mxu0 0.0
    %228 = vmatpush2.msra.mxu0 0.0
    %229 = vmatprep.subr.mxu0 0.0
    %230 = vmatpush2.msra.mxu0 0.0
    %231 = vmatprep.subr.mxu0 0.0
    %232 = vmatpush2.msra.mxu0 0.0
    %233 = vmatprep.subr.mxu0 0.0
    %234 = vmatpush2.msra.mxu0 0.0
    %235 = vmatprep.subr.mxu0 0.0
    %236 = vmatpush2.msra.mxu0 0.0
    %237 = vmatprep.subr.mxu0 0.0
    %238 = vmatpush2.msra.mxu0 0.0
    %239 = vmatprep.subr.mxu0 0.0
    %240 = vmatpush2.msra.mxu0 0.0
    %241 = vmatprep.mubr.f32.mxu0 0.0
    %242 = vmatmul.mubr.f32.gmra.mxu0 %v172
    %v243 = vpop.f32.mrf.mxu0
    %v244 = vadd.f32 %v169, %v243
    %v245 = vpop.f32.mrf.mxu0
    %246 = vmatprep.mubr.f32.mxu0 0.0
    %247 = vmatmul.mubr.f32.gmra.mxu0 %v175
    %v248 = vpop.f32.mrf.mxu0
    %v249 = vadd.f32 %v169, %v248
    %v250 = vpop.f32.mrf.mxu0
    %251 = vdwg.mxu0
    %v252 = vmul.f32 %v244, 0.35355338
    %v253 = vmul.f32 %v249, 0.35355338
    %255 = vrot.lane.b32.xlu0 %v244, 96
    %v256 = vpop.permute.xlu0 %255
    %vm257 = vcmask 64512
    %v259 = vsel %vm257, %v252, 0
    %v261 = vsel %vm257, %v256, 0
    %263 = vmatprep.subr.mxu0 0.0
    %264 = vmatpush1.xpose.msra.mxu0 0.0
    %265 = vmatprep.subr.mxu0 0.0
    %266 = vmatpush1.xpose.msra.mxu0 0.0
    %267 = vmatprep.subr.mxu0 0.0
    %268 = vmatpush1.xpose.msra.mxu0 0.0
    %269 = vmatprep.subr.mxu0 0.0
    %270 = vmatpush1.xpose.msra.mxu0 0.0
    %271 = vmatprep.subr.mxu0 0.0
    %272 = vmatpush1.xpose.msra.mxu0 0.0
    %273 = vmatprep.subr.mxu0 0.0
    %274 = vmatpush1.xpose.msra.mxu0 0.0
    %275 = vmatprep.subr.mxu0 0.0
    %276 = vmatpush1.xpose.msra.mxu0 0.0
    %277 = vmatprep.subr.mxu0 0.0
    %278 = vmatpush1.xpose.msra.mxu0 0.0
    %279 = vmatprep.subr.mxu0 0.0
    %280 = vmatpush1.xpose.msra.mxu0 0.0
    %281 = vmatprep.subr.mxu0 0.0
    %282 = vmatpush1.xpose.msra.mxu0 0.0
    %283 = vmatprep.subr.mxu0 0.0
    %284 = vmatpush1.xpose.msra.mxu0 0.0
    %285 = vmatprep.subr.mxu0 0.0
    %286 = vmatpush1.xpose.msra.mxu0 0.0
    %287 = vmatprep.subr.mxu0 0.0
    %288 = vmatpush1.xpose.msra.mxu0 0.0
    %289 = vmatprep.subr.mxu0 0.0
    %290 = vmatpush1.xpose.msra.mxu0 0.0
    %291 = vmatprep.subr.mxu0 0.0
    %292 = vmatpush1.xpose.msra.mxu0 0.0
    %293 = vmatprep.subr.mxu0 0.0
    %294 = vmatpush1.xpose.msra.mxu0 %v261
    %295 = vmatprep.subr.mxu0 0.0
    %296 = vmatpush2.xpose.msra.mxu0 0.0
    %297 = vmatprep.subr.mxu0 0.0
    %298 = vmatpush2.xpose.msra.mxu0 0.0
    %299 = vmatprep.subr.mxu0 0.0
    %300 = vmatpush2.xpose.msra.mxu0 0.0
    %301 = vmatprep.subr.mxu0 0.0
    %302 = vmatpush2.xpose.msra.mxu0 0.0
    %303 = vmatprep.subr.mxu0 0.0
    %304 = vmatpush2.xpose.msra.mxu0 0.0
    %305 = vmatprep.subr.mxu0 0.0
    %306 = vmatpush2.xpose.msra.mxu0 0.0
    %307 = vmatprep.subr.mxu0 0.0
    %308 = vmatpush2.xpose.msra.mxu0 0.0
    %309 = vmatprep.subr.mxu0 0.0
    %310 = vmatpush2.xpose.msra.mxu0 0.0
    %311 = vmatprep.subr.mxu0 0.0
    %312 = vmatpush2.xpose.msra.mxu0 0.0
    %313 = vmatprep.subr.mxu0 0.0
    %314 = vmatpush2.xpose.msra.mxu0 0.0
    %315 = vmatprep.subr.mxu0 0.0
    %316 = vmatpush2.xpose.msra.mxu0 0.0
    %317 = vmatprep.subr.mxu0 0.0
    %318 = vmatpush2.xpose.msra.mxu0 0.0
    %319 = vmatprep.subr.mxu0 0.0
    %320 = vmatpush2.xpose.msra.mxu0 0.0
    %321 = vmatprep.subr.mxu0 0.0
    %322 = vmatpush2.xpose.msra.mxu0 0.0
    %323 = vmatprep.subr.mxu0 0.0
    %324 = vmatpush2.xpose.msra.mxu0 0.0
    %325 = vmatprep.subr.mxu0 0.0
    %326 = vmatpush2.xpose.msra.mxu0 0.0
    %327 = vmatprep.mubr.f32.mxu0 0.0
    %328 = vmatmul.mubr.f32.gmra.mxu0 %v259
    %v329 = vpop.f32.mrf.mxu0
    %v330 = vadd.f32 0.0, %v329
    %v331 = vpop.f32.mrf.mxu0
    %332 = vdwg.mxu0
    %334 = vrot.lane.b32.xlu0 %v249, 96
    %v335 = vpop.permute.xlu0 %334
    %v337 = vsel %vm257, %v253, 0
    %v339 = vsel %vm257, %v335, 0
    %341 = vmatprep.subr.mxu0 0.0
    %342 = vmatpush1.xpose.msra.mxu0 0.0
    %343 = vmatprep.subr.mxu0 0.0
    %344 = vmatpush1.xpose.msra.mxu0 0.0
    %345 = vmatprep.subr.mxu0 0.0
    %346 = vmatpush1.xpose.msra.mxu0 0.0
    %347 = vmatprep.subr.mxu0 0.0
    %348 = vmatpush1.xpose.msra.mxu0 0.0
    %349 = vmatprep.subr.mxu0 0.0
    %350 = vmatpush1.xpose.msra.mxu0 0.0
    %351 = vmatprep.subr.mxu0 0.0
    %352 = vmatpush1.xpose.msra.mxu0 0.0
    %353 = vmatprep.subr.mxu0 0.0
    %354 = vmatpush1.xpose.msra.mxu0 0.0
    %355 = vmatprep.subr.mxu0 0.0
    %356 = vmatpush1.xpose.msra.mxu0 0.0
    %357 = vmatprep.subr.mxu0 0.0
    %358 = vmatpush1.xpose.msra.mxu0 0.0
    %359 = vmatprep.subr.mxu0 0.0
    %360 = vmatpush1.xpose.msra.mxu0 0.0
    %361 = vmatprep.subr.mxu0 0.0
    %362 = vmatpush1.xpose.msra.mxu0 0.0
    %363 = vmatprep.subr.mxu0 0.0
    %364 = vmatpush1.xpose.msra.mxu0 0.0
    %365 = vmatprep.subr.mxu0 0.0
    %366 = vmatpush1.xpose.msra.mxu0 0.0
    %367 = vmatprep.subr.mxu0 0.0
    %368 = vmatpush1.xpose.msra.mxu0 0.0
    %369 = vmatprep.subr.mxu0 0.0
    %370 = vmatpush1.xpose.msra.mxu0 0.0
    %371 = vmatprep.subr.mxu0 0.0
    %372 = vmatpush1.xpose.msra.mxu0 %v339
    %373 = vmatprep.subr.mxu0 0.0
    %374 = vmatpush2.xpose.msra.mxu0 0.0
    %375 = vmatprep.subr.mxu0 0.0
    %376 = vmatpush2.xpose.msra.mxu0 0.0
    %377 = vmatprep.subr.mxu0 0.0
    %378 = vmatpush2.xpose.msra.mxu0 0.0
    %379 = vmatprep.subr.mxu0 0.0
    %380 = vmatpush2.xpose.msra.mxu0 0.0
    %381 = vmatprep.subr.mxu0 0.0
    %382 = vmatpush2.xpose.msra.mxu0 0.0
    %383 = vmatprep.subr.mxu0 0.0
    %384 = vmatpush2.xpose.msra.mxu0 0.0
    %385 = vmatprep.subr.mxu0 0.0
    %386 = vmatpush2.xpose.msra.mxu0 0.0
    %387 = vmatprep.subr.mxu0 0.0
    %388 = vmatpush2.xpose.msra.mxu0 0.0
    %389 = vmatprep.subr.mxu0 0.0
    %390 = vmatpush2.xpose.msra.mxu0 0.0
    %391 = vmatprep.subr.mxu0 0.0
    %392 = vmatpush2.xpose.msra.mxu0 0.0
    %393 = vmatprep.subr.mxu0 0.0
    %394 = vmatpush2.xpose.msra.mxu0 0.0
    %395 = vmatprep.subr.mxu0 0.0
    %396 = vmatpush2.xpose.msra.mxu0 0.0
    %397 = vmatprep.subr.mxu0 0.0
    %398 = vmatpush2.xpose.msra.mxu0 0.0
    %399 = vmatprep.subr.mxu0 0.0
    %400 = vmatpush2.xpose.msra.mxu0 0.0
    %401 = vmatprep.subr.mxu0 0.0
    %402 = vmatpush2.xpose.msra.mxu0 0.0
    %403 = vmatprep.subr.mxu0 0.0
    %404 = vmatpush2.xpose.msra.mxu0 0.0
    %405 = vmatprep.mubr.f32.mxu0 0.0
    %406 = vmatmul.mubr.f32.gmra.mxu0 %v337
    %v407 = vpop.f32.mrf.mxu0
    %v408 = vadd.f32 0.0, %v407
    %v409 = vpop.f32.mrf.mxu0
    %410 = vdwg.mxu0
    %v411 = vsel %vm257, %v330, -inf
    %412 = vmax.xlane.f32.xlu0 %v411
    %v413 = vpop.xlane.xlu0 %412
    %v414 = vsel %vm257, %v408, -inf
    %415 = vmax.xlane.f32.xlu0 %v414
    %v416 = vpop.xlane.xlu0 %415
    %v417 = vsub.f32 %v330, %v413
    %v418 = vsub.f32 %v408, %v416
    %v419 = vmul.f32 %v417, 1.442695
    %v420 = vpow.pop %v419
    %v421 = vmul.f32 %v418, 1.442695
    %v422 = vpow.pop %v421
    %v423 = vsel %vm257, %v420, 0.0
    %424 = vadd.xlane.f32.xlu0 %v423
    %v425 = vpop.xlane.xlu0 %424
    %v426 = vsel %vm257, %v422, 0.0
    %427 = vadd.xlane.f32.xlu0 %v426
    %v428 = vpop.xlane.xlu0 %427
    %v429 = vrcp.pop %v425
    %v430 = vrcp.pop %v428
    %v431 = vmul.f32 %v420, %v429
    %v432 = vmul.f32 %v422, %v430
    %433 = vrot.lane.b32.xlu0 %v244, 64
    %v434 = vpop.permute.xlu0 %433
    %v437 = vsel %vm257, %v431, 0
    %439 = vmatprep.subr.mxu0 0.0
    %440 = vmatpush1.msra.mxu0 0.0
    %441 = vmatprep.subr.mxu0 0.0
    %442 = vmatpush1.msra.mxu0 0.0
    %443 = vmatprep.subr.mxu0 0.0
    %444 = vmatpush1.msra.mxu0 0.0
    %445 = vmatprep.subr.mxu0 0.0
    %446 = vmatpush1.msra.mxu0 0.0
    %447 = vmatprep.subr.mxu0 0.0
    %448 = vmatpush1.msra.mxu0 0.0
    %449 = vmatprep.subr.mxu0 0.0
    %450 = vmatpush1.msra.mxu0 0.0
    %451 = vmatprep.subr.mxu0 0.0
    %452 = vmatpush1.msra.mxu0 0.0
    %453 = vmatprep.subr.mxu0 0.0
    %454 = vmatpush1.msra.mxu0 0.0
    %455 = vmatprep.subr.mxu0 0.0
    %456 = vmatpush1.msra.mxu0 0.0
    %457 = vmatprep.subr.mxu0 0.0
    %458 = vmatpush1.msra.mxu0 0.0
    %459 = vmatprep.subr.mxu0 0.0
    %460 = vmatpush1.msra.mxu0 0.0
    %461 = vmatprep.subr.mxu0 0.0
    %462 = vmatpush1.msra.mxu0 0.0
    %463 = vmatprep.subr.mxu0 0.0
    %464 = vmatpush1.msra.mxu0 0.0
    %465 = vmatprep.subr.mxu0 0.0
    %466 = vmatpush1.msra.mxu0 0.0
    %467 = vmatprep.subr.mxu0 0.0
    %468 = vmatpush1.msra.mxu0 0.0
    %469 = vmatprep.subr.mxu0 0.0
    %470 = vmatpush1.msra.mxu0 %v434
    %471 = vmatprep.subr.mxu0 0.0
    %472 = vmatpush2.msra.mxu0 0.0
    %473 = vmatprep.subr.mxu0 0.0
    %474 = vmatpush2.msra.mxu0 0.0
    %475 = vmatprep.subr.mxu0 0.0
    %476 = vmatpush2.msra.mxu0 0.0
    %477 = vmatprep.subr.mxu0 0.0
    %478 = vmatpush2.msra.mxu0 0.0
    %479 = vmatprep.subr.mxu0 0.0
    %480 = vmatpush2.msra.mxu0 0.0
    %481 = vmatprep.subr.mxu0 0.0
    %482 = vmatpush2.msra.mxu0 0.0
    %483 = vmatprep.subr.mxu0 0.0
    %484 = vmatpush2.msra.mxu0 0.0
    %485 = vmatprep.subr.mxu0 0.0
    %486 = vmatpush2.msra.mxu0 0.0
    %487 = vmatprep.subr.mxu0 0.0
    %488 = vmatpush2.msra.mxu0 0.0
    %489 = vmatprep.subr.mxu0 0.0
    %490 = vmatpush2.msra.mxu0 0.0
    %491 = vmatprep.subr.mxu0 0.0
    %492 = vmatpush2.msra.mxu0 0.0
    %493 = vmatprep.subr.mxu0 0.0
    %494 = vmatpush2.msra.mxu0 0.0
    %495 = vmatprep.subr.mxu0 0.0
    %496 = vmatpush2.msra.mxu0 0.0
    %497 = vmatprep.subr.mxu0 0.0
    %498 = vmatpush2.msra.mxu0 0.0
    %499 = vmatprep.subr.mxu0 0.0
    %500 = vmatpush2.msra.mxu0 0.0
    %501 = vmatprep.subr.mxu0 0.0
    %502 = vmatpush2.msra.mxu0 0.0
    %503 = vmatprep.mubr.f32.mxu0 0.0
    %504 = vmatmul.mubr.f32.gmra.mxu0 %v437
    %v505 = vpop.f32.mrf.mxu0
    %v506 = vadd.f32 0.0, %v505
    %v507 = vpop.f32.mrf.mxu0
    %508 = vdwg.mxu0
    %509 = vrot.lane.b32.xlu0 %v249, 64
    %v510 = vpop.permute.xlu0 %509
    %v513 = vsel %vm257, %v432, 0
    %515 = vmatprep.subr.mxu0 0.0
    %516 = vmatpush1.msra.mxu0 0.0
    %517 = vmatprep.subr.mxu0 0.0
    %518 = vmatpush1.msra.mxu0 0.0
    %519 = vmatprep.subr.mxu0 0.0
    %520 = vmatpush1.msra.mxu0 0.0
    %521 = vmatprep.subr.mxu0 0.0
    %522 = vmatpush1.msra.mxu0 0.0
    %523 = vmatprep.subr.mxu0 0.0
    %524 = vmatpush1.msra.mxu0 0.0
    %525 = vmatprep.subr.mxu0 0.0
    %526 = vmatpush1.msra.mxu0 0.0
    %527 = vmatprep.subr.mxu0 0.0
    %528 = vmatpush1.msra.mxu0 0.0
    %529 = vmatprep.subr.mxu0 0.0
    %530 = vmatpush1.msra.mxu0 0.0
    %531 = vmatprep.subr.mxu0 0.0
    %532 = vmatpush1.msra.mxu0 0.0
    %533 = vmatprep.subr.mxu0 0.0
    %534 = vmatpush1.msra.mxu0 0.0
    %535 = vmatprep.subr.mxu0 0.0
    %536 = vmatpush1.msra.mxu0 0.0
    %537 = vmatprep.subr.mxu0 0.0
    %538 = vmatpush1.msra.mxu0 0.0
    %539 = vmatprep.subr.mxu0 0.0
    %540 = vmatpush1.msra.mxu0 0.0
    %541 = vmatprep.subr.mxu0 0.0
    %542 = vmatpush1.msra.mxu0 0.0
    %543 = vmatprep.subr.mxu0 0.0
    %544 = vmatpush1.msra.mxu0 0.0
    %545 = vmatprep.subr.mxu0 0.0
    %546 = vmatpush1.msra.mxu0 %v510
    %547 = vmatprep.subr.mxu0 0.0
    %548 = vmatpush2.msra.mxu0 0.0
    %549 = vmatprep.subr.mxu0 0.0
    %550 = vmatpush2.msra.mxu0 0.0
    %551 = vmatprep.subr.mxu0 0.0
    %552 = vmatpush2.msra.mxu0 0.0
    %553 = vmatprep.subr.mxu0 0.0
    %554 = vmatpush2.msra.mxu0 0.0
    %555 = vmatprep.subr.mxu0 0.0
    %556 = vmatpush2.msra.mxu0 0.0
    %557 = vmatprep.subr.mxu0 0.0
    %558 = vmatpush2.msra.mxu0 0.0
    %559 = vmatprep.subr.mxu0 0.0
    %560 = vmatpush2.msra.mxu0 0.0
    %561 = vmatprep.subr.mxu0 0.0
    %562 = vmatpush2.msra.mxu0 0.0
    %563 = vmatprep.subr.mxu0 0.0
    %564 = vmatpush2.msra.mxu0 0.0
    %565 = vmatprep.subr.mxu0 0.0
    %566 = vmatpush2.msra.mxu0 0.0
    %567 = vmatprep.subr.mxu0 0.0
    %568 = vmatpush2.msra.mxu0 0.0
    %569 = vmatprep.subr.mxu0 0.0
    %570 = vmatpush2.msra.mxu0 0.0
    %571 = vmatprep.subr.mxu0 0.0
    %572 = vmatpush2.msra.mxu0 0.0
    %573 = vmatprep.subr.mxu0 0.0
    %574 = vmatpush2.msra.mxu0 0.0
    %575 = vmatprep.subr.mxu0 0.0
    %576 = vmatpush2.msra.mxu0 0.0
    %577 = vmatprep.subr.mxu0 0.0
    %578 = vmatpush2.msra.mxu0 0.0
    %579 = vmatprep.mubr.f32.mxu0 0.0
    %580 = vmatmul.mubr.f32.gmra.mxu0 %v513
    %v581 = vpop.f32.mrf.mxu0
    %v582 = vadd.f32 0.0, %v581
    %v583 = vpop.f32.mrf.mxu0
    %584 = vdwg.mxu0
    %585 = vrot.lane.b32.xlu0 %v252, 120
    %v586 = vpop.permute.xlu0 %585
    %587 = vrot.lane.b32.xlu0 %v244, 88
    %v588 = vpop.permute.xlu0 %587
    %v589 = vsel %vm257, %v586, 0
    %v591 = vsel %vm257, %v588, 0
    %593 = vmatprep.subr.mxu0 0.0
    %594 = vmatpush1.xpose.msra.mxu0 0.0
    %595 = vmatprep.subr.mxu0 0.0
    %596 = vmatpush1.xpose.msra.mxu0 0.0
    %597 = vmatprep.subr.mxu0 0.0
    %598 = vmatpush1.xpose.msra.mxu0 0.0
    %599 = vmatprep.subr.mxu0 0.0
    %600 = vmatpush1.xpose.msra.mxu0 0.0
    %601 = vmatprep.subr.mxu0 0.0
    %602 = vmatpush1.xpose.msra.mxu0 0.0
    %603 = vmatprep.subr.mxu0 0.0
    %604 = vmatpush1.xpose.msra.mxu0 0.0
    %605 = vmatprep.subr.mxu0 0.0
    %606 = vmatpush1.xpose.msra.mxu0 0.0
    %607 = vmatprep.subr.mxu0 0.0
    %608 = vmatpush1.xpose.msra.mxu0 0.0
    %609 = vmatprep.subr.mxu0 0.0
    %610 = vmatpush1.xpose.msra.mxu0 0.0
    %611 = vmatprep.subr.mxu0 0.0
    %612 = vmatpush1.xpose.msra.mxu0 0.0
    %613 = vmatprep.subr.mxu0 0.0
    %614 = vmatpush1.xpose.msra.mxu0 0.0
    %615 = vmatprep.subr.mxu0 0.0
    %616 = vmatpush1.xpose.msra.mxu0 0.0
    %617 = vmatprep.subr.mxu0 0.0
    %618 = vmatpush1.xpose.msra.mxu0 0.0
    %619 = vmatprep.subr.mxu0 0.0
    %620 = vmatpush1.xpose.msra.mxu0 0.0
    %621 = vmatprep.subr.mxu0 0.0
    %622 = vmatpush1.xpose.msra.mxu0 0.0
    %623 = vmatprep.subr.mxu0 0.0
    %624 = vmatpush1.xpose.msra.mxu0 %v591
    %625 = vmatprep.subr.mxu0 0.0
    %626 = vmatpush2.xpose.msra.mxu0 0.0
    %627 = vmatprep.subr.mxu0 0.0
    %628 = vmatpush2.xpose.msra.mxu0 0.0
    %629 = vmatprep.subr.mxu0 0.0
    %630 = vmatpush2.xpose.msra.mxu0 0.0
    %631 = vmatprep.subr.mxu0 0.0
    %632 = vmatpush2.xpose.msra.mxu0 0.0
    %633 = vmatprep.subr.mxu0 0.0
    %634 = vmatpush2.xpose.msra.mxu0 0.0
    %635 = vmatprep.subr.mxu0 0.0
    %636 = vmatpush2.xpose.msra.mxu0 0.0
    %637 = vmatprep.subr.mxu0 0.0
    %638 = vmatpush2.xpose.msra.mxu0 0.0
    %639 = vmatprep.subr.mxu0 0.0
    %640 = vmatpush2.xpose.msra.mxu0 0.0
    %641 = vmatprep.subr.mxu0 0.0
    %642 = vmatpush2.xpose.msra.mxu0 0.0
    %643 = vmatprep.subr.mxu0 0.0
    %644 = vmatpush2.xpose.msra.mxu0 0.0
    %645 = vmatprep.subr.mxu0 0.0
    %646 = vmatpush2.xpose.msra.mxu0 0.0
    %647 = vmatprep.subr.mxu0 0.0
    %648 = vmatpush2.xpose.msra.mxu0 0.0
    %649 = vmatprep.subr.mxu0 0.0
    %650 = vmatpush2.xpose.msra.mxu0 0.0
    %651 = vmatprep.subr.mxu0 0.0
    %652 = vmatpush2.xpose.msra.mxu0 0.0
    %653 = vmatprep.subr.mxu0 0.0
    %654 = vmatpush2.xpose.msra.mxu0 0.0
    %655 = vmatprep.subr.mxu0 0.0
    %656 = vmatpush2.xpose.msra.mxu0 0.0
    %657 = vmatprep.mubr.f32.mxu0 0.0
    %658 = vmatmul.mubr.f32.gmra.mxu0 %v589
    %v659 = vpop.f32.mrf.mxu0
    %v660 = vadd.f32 0.0, %v659
    %v661 = vpop.f32.mrf.mxu0
    %662 = vdwg.mxu0
    %663 = vrot.lane.b32.xlu0 %v253, 120
    %v664 = vpop.permute.xlu0 %663
    %665 = vrot.lane.b32.xlu0 %v249, 88
    %v666 = vpop.permute.xlu0 %665
    %v667 = vsel %vm257, %v664, 0
    %v669 = vsel %vm257, %v666, 0
    %671 = vmatprep.subr.mxu0 0.0
    %672 = vmatpush1.xpose.msra.mxu0 0.0
    %673 = vmatprep.subr.mxu0 0.0
    %674 = vmatpush1.xpose.msra.mxu0 0.0
    %675 = vmatprep.subr.mxu0 0.0
    %676 = vmatpush1.xpose.msra.mxu0 0.0
    %677 = vmatprep.subr.mxu0 0.0
    %678 = vmatpush1.xpose.msra.mxu0 0.0
    %679 = vmatprep.subr.mxu0 0.0
    %680 = vmatpush1.xpose.msra.mxu0 0.0
    %681 = vmatprep.subr.mxu0 0.0
    %682 = vmatpush1.xpose.msra.mxu0 0.0
    %683 = vmatprep.subr.mxu0 0.0
    %684 = vmatpush1.xpose.msra.mxu0 0.0
    %685 = vmatprep.subr.mxu0 0.0
    %686 = vmatpush1.xpose.msra.mxu0 0.0
    %687 = vmatprep.subr.mxu0 0.0
    %688 = vmatpush1.xpose.msra.mxu0 0.0
    %689 = vmatprep.subr.mxu0 0.0
    %690 = vmatpush1.xpose.msra.mxu0 0.0
    %691 = vmatprep.subr.mxu0 0.0
    %692 = vmatpush1.xpose.msra.mxu0 0.0
    %693 = vmatprep.subr.mxu0 0.0
    %694 = vmatpush1.xpose.msra.mxu0 0.0
    %695 = vmatprep.subr.mxu0 0.0
    %696 = vmatpush1.xpose.msra.mxu0 0.0
    %697 = vmatprep.subr.mxu0 0.0
    %698 = vmatpush1.xpose.msra.mxu0 0.0
    %699 = vmatprep.subr.mxu0 0.0
    %700 = vmatpush1.xpose.msra.mxu0 0.0
    %701 = vmatprep.subr.mxu0 0.0
    %702 = vmatpush1.xpose.msra.mxu0 %v669
    %703 = vmatprep.subr.mxu0 0.0
    %704 = vmatpush2.xpose.msra.mxu0 0.0
    %705 = vmatprep.subr.mxu0 0.0
    %706 = vmatpush2.xpose.msra.mxu0 0.0
    %707 = vmatprep.subr.mxu0 0.0
    %708 = vmatpush2.xpose.msra.mxu0 0.0
    %709 = vmatprep.subr.mxu0 0.0
    %710 = vmatpush2.xpose.msra.mxu0 0.0
    %711 = vmatprep.subr.mxu0 0.0
    %712 = vmatpush2.xpose.msra.mxu0 0.0
    %713 = vmatprep.subr.mxu0 0.0
    %714 = vmatpush2.xpose.msra.mxu0 0.0
    %715 = vmatprep.subr.mxu0 0.0
    %716 = vmatpush2.xpose.msra.mxu0 0.0
    %717 = vmatprep.subr.mxu0 0.0
    %718 = vmatpush2.xpose.msra.mxu0 0.0
    %719 = vmatprep.subr.mxu0 0.0
    %720 = vmatpush2.xpose.msra.mxu0 0.0
    %721 = vmatprep.subr.mxu0 0.0
    %722 = vmatpush2.xpose.msra.mxu0 0.0
    %723 = vmatprep.subr.mxu0 0.0
    %724 = vmatpush2.xpose.msra.mxu0 0.0
    %725 = vmatprep.subr.mxu0 0.0
    %726 = vmatpush2.xpose.msra.mxu0 0.0
    %727 = vmatprep.subr.mxu0 0.0
    %728 = vmatpush2.xpose.msra.mxu0 0.0
    %729 = vmatprep.subr.mxu0 0.0
    %730 = vmatpush2.xpose.msra.mxu0 0.0
    %731 = vmatprep.subr.mxu0 0.0
    %732 = vmatpush2.xpose.msra.mxu0 0.0
    %733 = vmatprep.subr.mxu0 0.0
    %734 = vmatpush2.xpose.msra.mxu0 0.0
    %735 = vmatprep.mubr.f32.mxu0 0.0
    %736 = vmatmul.mubr.f32.gmra.mxu0 %v667
    %v737 = vpop.f32.mrf.mxu0
    %v738 = vadd.f32 0.0, %v737
    %v739 = vpop.f32.mrf.mxu0
    %740 = vdwg.mxu0
    %v741 = vsel %vm257, %v660, -inf
    %742 = vmax.xlane.f32.xlu0 %v741
    %v743 = vpop.xlane.xlu0 %742
    %v744 = vsel %vm257, %v738, -inf
    %745 = vmax.xlane.f32.xlu0 %v744
    %v746 = vpop.xlane.xlu0 %745
    %v747 = vsub.f32 %v660, %v743
    %v748 = vsub.f32 %v738, %v746
    %v749 = vmul.f32 %v747, 1.442695
    %v750 = vpow.pop %v749
    %v751 = vmul.f32 %v748, 1.442695
    %v752 = vpow.pop %v751
    %v753 = vsel %vm257, %v750, 0.0
    %754 = vadd.xlane.f32.xlu0 %v753
    %v755 = vpop.xlane.xlu0 %754
    %v756 = vsel %vm257, %v752, 0.0
    %757 = vadd.xlane.f32.xlu0 %v756
    %v758 = vpop.xlane.xlu0 %757
    %v759 = vrcp.pop %v755
    %v760 = vrcp.pop %v758
    %v761 = vmul.f32 %v750, %v759
    %v762 = vmul.f32 %v752, %v760
    %763 = vrot.lane.b32.xlu0 %v244, 56
    %v764 = vpop.permute.xlu0 %763
    %v767 = vsel %vm257, %v761, 0
    %769 = vmatprep.subr.mxu0 0.0
    %770 = vmatpush1.msra.mxu0 0.0
    %771 = vmatprep.subr.mxu0 0.0
    %772 = vmatpush1.msra.mxu0 0.0
    %773 = vmatprep.subr.mxu0 0.0
    %774 = vmatpush1.msra.mxu0 0.0
    %775 = vmatprep.subr.mxu0 0.0
    %776 = vmatpush1.msra.mxu0 0.0
    %777 = vmatprep.subr.mxu0 0.0
    %778 = vmatpush1.msra.mxu0 0.0
    %779 = vmatprep.subr.mxu0 0.0
    %780 = vmatpush1.msra.mxu0 0.0
    %781 = vmatprep.subr.mxu0 0.0
    %782 = vmatpush1.msra.mxu0 0.0
    %783 = vmatprep.subr.mxu0 0.0
    %784 = vmatpush1.msra.mxu0 0.0
    %785 = vmatprep.subr.mxu0 0.0
    %786 = vmatpush1.msra.mxu0 0.0
    %787 = vmatprep.subr.mxu0 0.0
    %788 = vmatpush1.msra.mxu0 0.0
    %789 = vmatprep.subr.mxu0 0.0
    %790 = vmatpush1.msra.mxu0 0.0
    %791 = vmatprep.subr.mxu0 0.0
    %792 = vmatpush1.msra.mxu0 0.0
    %793 = vmatprep.subr.mxu0 0.0
    %794 = vmatpush1.msra.mxu0 0.0
    %795 = vmatprep.subr.mxu0 0.0
    %796 = vmatpush1.msra.mxu0 0.0
    %797 = vmatprep.subr.mxu0 0.0
    %798 = vmatpush1.msra.mxu0 0.0
    %799 = vmatprep.subr.mxu0 0.0
    %800 = vmatpush1.msra.mxu0 %v764
    %801 = vmatprep.subr.mxu0 0.0
    %802 = vmatpush2.msra.mxu0 0.0
    %803 = vmatprep.subr.mxu0 0.0
    %804 = vmatpush2.msra.mxu0 0.0
    %805 = vmatprep.subr.mxu0 0.0
    %806 = vmatpush2.msra.mxu0 0.0
    %807 = vmatprep.subr.mxu0 0.0
    %808 = vmatpush2.msra.mxu0 0.0
    %809 = vmatprep.subr.mxu0 0.0
    %810 = vmatpush2.msra.mxu0 0.0
    %811 = vmatprep.subr.mxu0 0.0
    %812 = vmatpush2.msra.mxu0 0.0
    %813 = vmatprep.subr.mxu0 0.0
    %814 = vmatpush2.msra.mxu0 0.0
    %815 = vmatprep.subr.mxu0 0.0
    %816 = vmatpush2.msra.mxu0 0.0
    %817 = vmatprep.subr.mxu0 0.0
    %818 = vmatpush2.msra.mxu0 0.0
    %819 = vmatprep.subr.mxu0 0.0
    %820 = vmatpush2.msra.mxu0 0.0
    %821 = vmatprep.subr.mxu0 0.0
    %822 = vmatpush2.msra.mxu0 0.0
    %823 = vmatprep.subr.mxu0 0.0
    %824 = vmatpush2.msra.mxu0 0.0
    %825 = vmatprep.subr.mxu0 0.0
    %826 = vmatpush2.msra.mxu0 0.0
    %827 = vmatprep.subr.mxu0 0.0
    %828 = vmatpush2.msra.mxu0 0.0
    %829 = vmatprep.subr.mxu0 0.0
    %830 = vmatpush2.msra.mxu0 0.0
    %831 = vmatprep.subr.mxu0 0.0
    %832 = vmatpush2.msra.mxu0 0.0
    %833 = vmatprep.mubr.f32.mxu0 0.0
    %834 = vmatmul.mubr.f32.gmra.mxu0 %v767
    %v835 = vpop.f32.mrf.mxu0
    %v836 = vadd.f32 0.0, %v835
    %v837 = vpop.f32.mrf.mxu0
    %838 = vdwg.mxu0
    %839 = vrot.lane.b32.xlu0 %v249, 56
    %v840 = vpop.permute.xlu0 %839
    %v843 = vsel %vm257, %v762, 0
    %845 = vmatprep.subr.mxu0 0.0
    %846 = vmatpush1.msra.mxu0 0.0
    %847 = vmatprep.subr.mxu0 0.0
    %848 = vmatpush1.msra.mxu0 0.0
    %849 = vmatprep.subr.mxu0 0.0
    %850 = vmatpush1.msra.mxu0 0.0
    %851 = vmatprep.subr.mxu0 0.0
    %852 = vmatpush1.msra.mxu0 0.0
    %853 = vmatprep.subr.mxu0 0.0
    %854 = vmatpush1.msra.mxu0 0.0
    %855 = vmatprep.subr.mxu0 0.0
    %856 = vmatpush1.msra.mxu0 0.0
    %857 = vmatprep.subr.mxu0 0.0
    %858 = vmatpush1.msra.mxu0 0.0
    %859 = vmatprep.subr.mxu0 0.0
    %860 = vmatpush1.msra.mxu0 0.0
    %861 = vmatprep.subr.mxu0 0.0
    %862 = vmatpush1.msra.mxu0 0.0
    %863 = vmatprep.subr.mxu0 0.0
    %864 = vmatpush1.msra.mxu0 0.0
    %865 = vmatprep.subr.mxu0 0.0
    %866 = vmatpush1.msra.mxu0 0.0
    %867 = vmatprep.subr.mxu0 0.0
    %868 = vmatpush1.msra.mxu0 0.0
    %869 = vmatprep.subr.mxu0 0.0
    %870 = vmatpush1.msra.mxu0 0.0
    %871 = vmatprep.subr.mxu0 0.0
    %872 = vmatpush1.msra.mxu0 0.0
    %873 = vmatprep.subr.mxu0 0.0
    %874 = vmatpush1.msra.mxu0 0.0
    %875 = vmatprep.subr.mxu0 0.0
    %876 = vmatpush1.msra.mxu0 %v840
    %877 = vmatprep.subr.mxu0 0.0
    %878 = vmatpush2.msra.mxu0 0.0
    %879 = vmatprep.subr.mxu0 0.0
    %880 = vmatpush2.msra.mxu0 0.0
    %881 = vmatprep.subr.mxu0 0.0
    %882 = vmatpush2.msra.mxu0 0.0
    %883 = vmatprep.subr.mxu0 0.0
    %884 = vmatpush2.msra.mxu0 0.0
    %885 = vmatprep.subr.mxu0 0.0
    %886 = vmatpush2.msra.mxu0 0.0
    %887 = vmatprep.subr.mxu0 0.0
    %888 = vmatpush2.msra.mxu0 0.0
    %889 = vmatprep.subr.mxu0 0.0
    %890 = vmatpush2.msra.mxu0 0.0
    %891 = vmatprep.subr.mxu0 0.0
    %892 = vmatpush2.msra.mxu0 0.0
    %893 = vmatprep.subr.mxu0 0.0
    %894 = vmatpush2.msra.mxu0 0.0
    %895 = vmatprep.subr.mxu0 0.0
    %896 = vmatpush2.msra.mxu0 0.0
    %897 = vmatprep.subr.mxu0 0.0
    %898 = vmatpush2.msra.mxu0 0.0
    %899 = vmatprep.subr.mxu0 0.0
    %900 = vmatpush2.msra.mxu0 0.0
    %901 = vmatprep.subr.mxu0 0.0
    %902 = vmatpush2.msra.mxu0 0.0
    %903 = vmatprep.subr.mxu0 0.0
    %904 = vmatpush2.msra.mxu0 0.0
    %905 = vmatprep.subr.mxu0 0.0
    %906 = vmatpush2.msra.mxu0 0.0
    %907 = vmatprep.subr.mxu0 0.0
    %908 = vmatpush2.msra.mxu0 0.0
    %909 = vmatprep.mubr.f32.mxu0 0.0
    %910 = vmatmul.mubr.f32.gmra.mxu0 %v843
    %v911 = vpop.f32.mrf.mxu0
    %v912 = vadd.f32 0.0, %v911
    %v913 = vpop.f32.mrf.mxu0
    %914 = vdwg.mxu0
    %915 = vrot.lane.b32.xlu0 %v252, 112
    %v916 = vpop.permute.xlu0 %915
    %917 = vrot.lane.b32.xlu0 %v244, 80
    %v918 = vpop.permute.xlu0 %917
    %v919 = vsel %vm257, %v916, 0
    %v921 = vsel %vm257, %v918, 0
    %923 = vmatprep.subr.mxu0 0.0
    %924 = vmatpush1.xpose.msra.mxu0 0.0
    %925 = vmatprep.subr.mxu0 0.0
    %926 = vmatpush1.xpose.msra.mxu0 0.0
    %927 = vmatprep.subr.mxu0 0.0
    %928 = vmatpush1.xpose.msra.mxu0 0.0
    %929 = vmatprep.subr.mxu0 0.0
    %930 = vmatpush1.xpose.msra.mxu0 0.0
    %931 = vmatprep.subr.mxu0 0.0
    %932 = vmatpush1.xpose.msra.mxu0 0.0
    %933 = vmatprep.subr.mxu0 0.0
    %934 = vmatpush1.xpose.msra.mxu0 0.0
    %935 = vmatprep.subr.mxu0 0.0
    %936 = vmatpush1.xpose.msra.mxu0 0.0
    %937 = vmatprep.subr.mxu0 0.0
    %938 = vmatpush1.xpose.msra.mxu0 0.0
    %939 = vmatprep.subr.mxu0 0.0
    %940 = vmatpush1.xpose.msra.mxu0 0.0
    %941 = vmatprep.subr.mxu0 0.0
    %942 = vmatpush1.xpose.msra.mxu0 0.0
    %943 = vmatprep.subr.mxu0 0.0
    %944 = vmatpush1.xpose.msra.mxu0 0.0
    %945 = vmatprep.subr.mxu0 0.0
    %946 = vmatpush1.xpose.msra.mxu0 0.0
    %947 = vmatprep.subr.mxu0 0.0
    %948 = vmatpush1.xpose.msra.mxu0 0.0
    %949 = vmatprep.subr.mxu0 0.0
    %950 = vmatpush1.xpose.msra.mxu0 0.0
    %951 = vmatprep.subr.mxu0 0.0
    %952 = vmatpush1.xpose.msra.mxu0 0.0
    %953 = vmatprep.subr.mxu0 0.0
    %954 = vmatpush1.xpose.msra.mxu0 %v921
    %955 = vmatprep.subr.mxu0 0.0
    %956 = vmatpush2.xpose.msra.mxu0 0.0
    %957 = vmatprep.subr.mxu0 0.0
    %958 = vmatpush2.xpose.msra.mxu0 0.0
    %959 = vmatprep.subr.mxu0 0.0
    %960 = vmatpush2.xpose.msra.mxu0 0.0
    %961 = vmatprep.subr.mxu0 0.0
    %962 = vmatpush2.xpose.msra.mxu0 0.0
    %963 = vmatprep.subr.mxu0 0.0
    %964 = vmatpush2.xpose.msra.mxu0 0.0
    %965 = vmatprep.subr.mxu0 0.0
    %966 = vmatpush2.xpose.msra.mxu0 0.0
    %967 = vmatprep.subr.mxu0 0.0
    %968 = vmatpush2.xpose.msra.mxu0 0.0
    %969 = vmatprep.subr.mxu0 0.0
    %970 = vmatpush2.xpose.msra.mxu0 0.0
    %971 = vmatprep.subr.mxu0 0.0
    %972 = vmatpush2.xpose.msra.mxu0 0.0
    %973 = vmatprep.subr.mxu0 0.0
    %974 = vmatpush2.xpose.msra.mxu0 0.0
    %975 = vmatprep.subr.mxu0 0.0
    %976 = vmatpush2.xpose.msra.mxu0 0.0
    %977 = vmatprep.subr.mxu0 0.0
    %978 = vmatpush2.xpose.msra.mxu0 0.0
    %979 = vmatprep.subr.mxu0 0.0
    %980 = vmatpush2.xpose.msra.mxu0 0.0
    %981 = vmatprep.subr.mxu0 0.0
    %982 = vmatpush2.xpose.msra.mxu0 0.0
    %983 = vmatprep.subr.mxu0 0.0
    %984 = vmatpush2.xpose.msra.mxu0 0.0
    %985 = vmatprep.subr.mxu0 0.0
    %986 = vmatpush2.xpose.msra.mxu0 0.0
    %987 = vmatprep.mubr.f32.mxu0 0.0
    %988 = vmatmul.mubr.f32.gmra.mxu0 %v919
    %v989 = vpop.f32.mrf.mxu0
    %v990 = vadd.f32 0.0, %v989
    %v991 = vpop.f32.mrf.mxu0
    %992 = vdwg.mxu0
    %993 = vrot.lane.b32.xlu0 %v253, 112
    %v994 = vpop.permute.xlu0 %993
    %995 = vrot.lane.b32.xlu0 %v249, 80
    %v996 = vpop.permute.xlu0 %995
    %v997 = vsel %vm257, %v994, 0
    %v999 = vsel %vm257, %v996, 0
    %1001 = vmatprep.subr.mxu0 0.0
    %1002 = vmatpush1.xpose.msra.mxu0 0.0
    %1003 = vmatprep.subr.mxu0 0.0
    %1004 = vmatpush1.xpose.msra.mxu0 0.0
    %1005 = vmatprep.subr.mxu0 0.0
    %1006 = vmatpush1.xpose.msra.mxu0 0.0
    %1007 = vmatprep.subr.mxu0 0.0
    %1008 = vmatpush1.xpose.msra.mxu0 0.0
    %1009 = vmatprep.subr.mxu0 0.0
    %1010 = vmatpush1.xpose.msra.mxu0 0.0
    %1011 = vmatprep.subr.mxu0 0.0
    %1012 = vmatpush1.xpose.msra.mxu0 0.0
    %1013 = vmatprep.subr.mxu0 0.0
    %1014 = vmatpush1.xpose.msra.mxu0 0.0
    %1015 = vmatprep.subr.mxu0 0.0
    %1016 = vmatpush1.xpose.msra.mxu0 0.0
    %1017 = vmatprep.subr.mxu0 0.0
    %1018 = vmatpush1.xpose.msra.mxu0 0.0
    %1019 = vmatprep.subr.mxu0 0.0
    %1020 = vmatpush1.xpose.msra.mxu0 0.0
    %1021 = vmatprep.subr.mxu0 0.0
    %1022 = vmatpush1.xpose.msra.mxu0 0.0
    %1023 = vmatprep.subr.mxu0 0.0
    %1024 = vmatpush1.xpose.msra.mxu0 0.0
    %1025 = vmatprep.subr.mxu0 0.0
    %1026 = vmatpush1.xpose.msra.mxu0 0.0
    %1027 = vmatprep.subr.mxu0 0.0
    %1028 = vmatpush1.xpose.msra.mxu0 0.0
    %1029 = vmatprep.subr.mxu0 0.0
    %1030 = vmatpush1.xpose.msra.mxu0 0.0
    %1031 = vmatprep.subr.mxu0 0.0
    %1032 = vmatpush1.xpose.msra.mxu0 %v999
    %1033 = vmatprep.subr.mxu0 0.0
    %1034 = vmatpush2.xpose.msra.mxu0 0.0
    %1035 = vmatprep.subr.mxu0 0.0
    %1036 = vmatpush2.xpose.msra.mxu0 0.0
    %1037 = vmatprep.subr.mxu0 0.0
    %1038 = vmatpush2.xpose.msra.mxu0 0.0
    %1039 = vmatprep.subr.mxu0 0.0
    %1040 = vmatpush2.xpose.msra.mxu0 0.0
    %1041 = vmatprep.subr.mxu0 0.0
    %1042 = vmatpush2.xpose.msra.mxu0 0.0
    %1043 = vmatprep.subr.mxu0 0.0
    %1044 = vmatpush2.xpose.msra.mxu0 0.0
    %1045 = vmatprep.subr.mxu0 0.0
    %1046 = vmatpush2.xpose.msra.mxu0 0.0
    %1047 = vmatprep.subr.mxu0 0.0
    %1048 = vmatpush2.xpose.msra.mxu0 0.0
    %1049 = vmatprep.subr.mxu0 0.0
    %1050 = vmatpush2.xpose.msra.mxu0 0.0
    %1051 = vmatprep.subr.mxu0 0.0
    %1052 = vmatpush2.xpose.msra.mxu0 0.0
    %1053 = vmatprep.subr.mxu0 0.0
    %1054 = vmatpush2.xpose.msra.mxu0 0.0
    %1055 = vmatprep.subr.mxu0 0.0
    %1056 = vmatpush2.xpose.msra.mxu0 0.0
    %1057 = vmatprep.subr.mxu0 0.0
    %1058 = vmatpush2.xpose.msra.mxu0 0.0
    %1059 = vmatprep.subr.mxu0 0.0
    %1060 = vmatpush2.xpose.msra.mxu0 0.0
    %1061 = vmatprep.subr.mxu0 0.0
    %1062 = vmatpush2.xpose.msra.mxu0 0.0
    %1063 = vmatprep.subr.mxu0 0.0
    %1064 = vmatpush2.xpose.msra.mxu0 0.0
    %1065 = vmatprep.mubr.f32.mxu0 0.0
    %1066 = vmatmul.mubr.f32.gmra.mxu0 %v997
    %v1067 = vpop.f32.mrf.mxu0
    %v1068 = vadd.f32 0.0, %v1067
    %v1069 = vpop.f32.mrf.mxu0
    %1070 = vdwg.mxu0
    %v1071 = vsel %vm257, %v990, -inf
    %1072 = vmax.xlane.f32.xlu0 %v1071
    %v1073 = vpop.xlane.xlu0 %1072
    %v1074 = vsel %vm257, %v1068, -inf
    %1075 = vmax.xlane.f32.xlu0 %v1074
    %v1076 = vpop.xlane.xlu0 %1075
    %v1077 = vsub.f32 %v990, %v1073
    %v1078 = vsub.f32 %v1068, %v1076
    %v1079 = vmul.f32 %v1077, 1.442695
    %v1080 = vpow.pop %v1079
    %v1081 = vmul.f32 %v1078, 1.442695
    %v1082 = vpow.pop %v1081
    %v1083 = vsel %vm257, %v1080, 0.0
    %1084 = vadd.xlane.f32.xlu0 %v1083
    %v1085 = vpop.xlane.xlu0 %1084
    %v1086 = vsel %vm257, %v1082, 0.0
    %1087 = vadd.xlane.f32.xlu0 %v1086
    %v1088 = vpop.xlane.xlu0 %1087
    %v1089 = vrcp.pop %v1085
    %v1090 = vrcp.pop %v1088
    %v1091 = vmul.f32 %v1080, %v1089
    %v1092 = vmul.f32 %v1082, %v1090
    %1093 = vrot.lane.b32.xlu0 %v244, 48
    %v1094 = vpop.permute.xlu0 %1093
    %v1097 = vsel %vm257, %v1091, 0
    %1099 = vmatprep.subr.mxu0 0.0
    %1100 = vmatpush1.msra.mxu0 0.0
    %1101 = vmatprep.subr.mxu0 0.0
    %1102 = vmatpush1.msra.mxu0 0.0
    %1103 = vmatprep.subr.mxu0 0.0
    %1104 = vmatpush1.msra.mxu0 0.0
    %1105 = vmatprep.subr.mxu0 0.0
    %1106 = vmatpush1.msra.mxu0 0.0
    %1107 = vmatprep.subr.mxu0 0.0
    %1108 = vmatpush1.msra.mxu0 0.0
    %1109 = vmatprep.subr.mxu0 0.0
    %1110 = vmatpush1.msra.mxu0 0.0
    %1111 = vmatprep.subr.mxu0 0.0
    %1112 = vmatpush1.msra.mxu0 0.0
    %1113 = vmatprep.subr.mxu0 0.0
    %1114 = vmatpush1.msra.mxu0 0.0
    %1115 = vmatprep.subr.mxu0 0.0
    %1116 = vmatpush1.msra.mxu0 0.0
    %1117 = vmatprep.subr.mxu0 0.0
    %1118 = vmatpush1.msra.mxu0 0.0
    %1119 = vmatprep.subr.mxu0 0.0
    %1120 = vmatpush1.msra.mxu0 0.0
    %1121 = vmatprep.subr.mxu0 0.0
    %1122 = vmatpush1.msra.mxu0 0.0
    %1123 = vmatprep.subr.mxu0 0.0
    %1124 = vmatpush1.msra.mxu0 0.0
    %1125 = vmatprep.subr.mxu0 0.0
    %1126 = vmatpush1.msra.mxu0 0.0
    %1127 = vmatprep.subr.mxu0 0.0
    %1128 = vmatpush1.msra.mxu0 0.0
    %1129 = vmatprep.subr.mxu0 0.0
    %1130 = vmatpush1.msra.mxu0 %v1094
    %1131 = vmatprep.subr.mxu0 0.0
    %1132 = vmatpush2.msra.mxu0 0.0
    %1133 = vmatprep.subr.mxu0 0.0
    %1134 = vmatpush2.msra.mxu0 0.0
    %1135 = vmatprep.subr.mxu0 0.0
    %1136 = vmatpush2.msra.mxu0 0.0
    %1137 = vmatprep.subr.mxu0 0.0
    %1138 = vmatpush2.msra.mxu0 0.0
    %1139 = vmatprep.subr.mxu0 0.0
    %1140 = vmatpush2.msra.mxu0 0.0
    %1141 = vmatprep.subr.mxu0 0.0
    %1142 = vmatpush2.msra.mxu0 0.0
    %1143 = vmatprep.subr.mxu0 0.0
    %1144 = vmatpush2.msra.mxu0 0.0
    %1145 = vmatprep.subr.mxu0 0.0
    %1146 = vmatpush2.msra.mxu0 0.0
    %1147 = vmatprep.subr.mxu0 0.0
    %1148 = vmatpush2.msra.mxu0 0.0
    %1149 = vmatprep.subr.mxu0 0.0
    %1150 = vmatpush2.msra.mxu0 0.0
    %1151 = vmatprep.subr.mxu0 0.0
    %1152 = vmatpush2.msra.mxu0 0.0
    %1153 = vmatprep.subr.mxu0 0.0
    %1154 = vmatpush2.msra.mxu0 0.0
    %1155 = vmatprep.subr.mxu0 0.0
    %1156 = vmatpush2.msra.mxu0 0.0
    %1157 = vmatprep.subr.mxu0 0.0
    %1158 = vmatpush2.msra.mxu0 0.0
    %1159 = vmatprep.subr.mxu0 0.0
    %1160 = vmatpush2.msra.mxu0 0.0
    %1161 = vmatprep.subr.mxu0 0.0
    %1162 = vmatpush2.msra.mxu0 0.0
    %1163 = vmatprep.mubr.f32.mxu0 0.0
    %1164 = vmatmul.mubr.f32.gmra.mxu0 %v1097
    %v1165 = vpop.f32.mrf.mxu0
    %v1166 = vadd.f32 0.0, %v1165
    %v1167 = vpop.f32.mrf.mxu0
    %1168 = vdwg.mxu0
    %1169 = vrot.lane.b32.xlu0 %v249, 48
    %v1170 = vpop.permute.xlu0 %1169
    %v1173 = vsel %vm257, %v1092, 0
    %1175 = vmatprep.subr.mxu0 0.0
    %1176 = vmatpush1.msra.mxu0 0.0
    %1177 = vmatprep.subr.mxu0 0.0
    %1178 = vmatpush1.msra.mxu0 0.0
    %1179 = vmatprep.subr.mxu0 0.0
    %1180 = vmatpush1.msra.mxu0 0.0
    %1181 = vmatprep.subr.mxu0 0.0
    %1182 = vmatpush1.msra.mxu0 0.0
    %1183 = vmatprep.subr.mxu0 0.0
    %1184 = vmatpush1.msra.mxu0 0.0
    %1185 = vmatprep.subr.mxu0 0.0
    %1186 = vmatpush1.msra.mxu0 0.0
    %1187 = vmatprep.subr.mxu0 0.0
    %1188 = vmatpush1.msra.mxu0 0.0
    %1189 = vmatprep.subr.mxu0 0.0
    %1190 = vmatpush1.msra.mxu0 0.0
    %1191 = vmatprep.subr.mxu0 0.0
    %1192 = vmatpush1.msra.mxu0 0.0
    %1193 = vmatprep.subr.mxu0 0.0
    %1194 = vmatpush1.msra.mxu0 0.0
    %1195 = vmatprep.subr.mxu0 0.0
    %1196 = vmatpush1.msra.mxu0 0.0
    %1197 = vmatprep.subr.mxu0 0.0
    %1198 = vmatpush1.msra.mxu0 0.0
    %1199 = vmatprep.subr.mxu0 0.0
    %1200 = vmatpush1.msra.mxu0 0.0
    %1201 = vmatprep.subr.mxu0 0.0
    %1202 = vmatpush1.msra.mxu0 0.0
    %1203 = vmatprep.subr.mxu0 0.0
    %1204 = vmatpush1.msra.mxu0 0.0
    %1205 = vmatprep.subr.mxu0 0.0
    %1206 = vmatpush1.msra.mxu0 %v1170
    %1207 = vmatprep.subr.mxu0 0.0
    %1208 = vmatpush2.msra.mxu0 0.0
    %1209 = vmatprep.subr.mxu0 0.0
    %1210 = vmatpush2.msra.mxu0 0.0
    %1211 = vmatprep.subr.mxu0 0.0
    %1212 = vmatpush2.msra.mxu0 0.0
    %1213 = vmatprep.subr.mxu0 0.0
    %1214 = vmatpush2.msra.mxu0 0.0
    %1215 = vmatprep.subr.mxu0 0.0
    %1216 = vmatpush2.msra.mxu0 0.0
    %1217 = vmatprep.subr.mxu0 0.0
    %1218 = vmatpush2.msra.mxu0 0.0
    %1219 = vmatprep.subr.mxu0 0.0
    %1220 = vmatpush2.msra.mxu0 0.0
    %1221 = vmatprep.subr.mxu0 0.0
    %1222 = vmatpush2.msra.mxu0 0.0
    %1223 = vmatprep.subr.mxu0 0.0
    %1224 = vmatpush2.msra.mxu0 0.0
    %1225 = vmatprep.subr.mxu0 0.0
    %1226 = vmatpush2.msra.mxu0 0.0
    %1227 = vmatprep.subr.mxu0 0.0
    %1228 = vmatpush2.msra.mxu0 0.0
    %1229 = vmatprep.subr.mxu0 0.0
    %1230 = vmatpush2.msra.mxu0 0.0
    %1231 = vmatprep.subr.mxu0 0.0
    %1232 = vmatpush2.msra.mxu0 0.0
    %1233 = vmatprep.subr.mxu0 0.0
    %1234 = vmatpush2.msra.mxu0 0.0
    %1235 = vmatprep.subr.mxu0 0.0
    %1236 = vmatpush2.msra.mxu0 0.0
    %1237 = vmatprep.subr.mxu0 0.0
    %1238 = vmatpush2.msra.mxu0 0.0
    %1239 = vmatprep.mubr.f32.mxu0 0.0
    %1240 = vmatmul.mubr.f32.gmra.mxu0 %v1173
    %v1241 = vpop.f32.mrf.mxu0
    %v1242 = vadd.f32 0.0, %v1241
    %v1243 = vpop.f32.mrf.mxu0
    %1244 = vdwg.mxu0
    %1245 = vrot.lane.b32.xlu0 %v252, 104
    %v1246 = vpop.permute.xlu0 %1245
    %1247 = vrot.lane.b32.xlu0 %v244, 72
    %v1248 = vpop.permute.xlu0 %1247
    %v1249 = vsel %vm257, %v1246, 0
    %v1251 = vsel %vm257, %v1248, 0
    %1253 = vmatprep.subr.mxu0 0.0
    %1254 = vmatpush1.xpose.msra.mxu0 0.0
    %1255 = vmatprep.subr.mxu0 0.0
    %1256 = vmatpush1.xpose.msra.mxu0 0.0
    %1257 = vmatprep.subr.mxu0 0.0
    %1258 = vmatpush1.xpose.msra.mxu0 0.0
    %1259 = vmatprep.subr.mxu0 0.0
    %1260 = vmatpush1.xpose.msra.mxu0 0.0
    %1261 = vmatprep.subr.mxu0 0.0
    %1262 = vmatpush1.xpose.msra.mxu0 0.0
    %1263 = vmatprep.subr.mxu0 0.0
    %1264 = vmatpush1.xpose.msra.mxu0 0.0
    %1265 = vmatprep.subr.mxu0 0.0
    %1266 = vmatpush1.xpose.msra.mxu0 0.0
    %1267 = vmatprep.subr.mxu0 0.0
    %1268 = vmatpush1.xpose.msra.mxu0 0.0
    %1269 = vmatprep.subr.mxu0 0.0
    %1270 = vmatpush1.xpose.msra.mxu0 0.0
    %1271 = vmatprep.subr.mxu0 0.0
    %1272 = vmatpush1.xpose.msra.mxu0 0.0
    %1273 = vmatprep.subr.mxu0 0.0
    %1274 = vmatpush1.xpose.msra.mxu0 0.0
    %1275 = vmatprep.subr.mxu0 0.0
    %1276 = vmatpush1.xpose.msra.mxu0 0.0
    %1277 = vmatprep.subr.mxu0 0.0
    %1278 = vmatpush1.xpose.msra.mxu0 0.0
    %1279 = vmatprep.subr.mxu0 0.0
    %1280 = vmatpush1.xpose.msra.mxu0 0.0
    %1281 = vmatprep.subr.mxu0 0.0
    %1282 = vmatpush1.xpose.msra.mxu0 0.0
    %1283 = vmatprep.subr.mxu0 0.0
    %1284 = vmatpush1.xpose.msra.mxu0 %v1251
    %1285 = vmatprep.subr.mxu0 0.0
    %1286 = vmatpush2.xpose.msra.mxu0 0.0
    %1287 = vmatprep.subr.mxu0 0.0
    %1288 = vmatpush2.xpose.msra.mxu0 0.0
    %1289 = vmatprep.subr.mxu0 0.0
    %1290 = vmatpush2.xpose.msra.mxu0 0.0
    %1291 = vmatprep.subr.mxu0 0.0
    %1292 = vmatpush2.xpose.msra.mxu0 0.0
    %1293 = vmatprep.subr.mxu0 0.0
    %1294 = vmatpush2.xpose.msra.mxu0 0.0
    %1295 = vmatprep.subr.mxu0 0.0
    %1296 = vmatpush2.xpose.msra.mxu0 0.0
    %1297 = vmatprep.subr.mxu0 0.0
    %1298 = vmatpush2.xpose.msra.mxu0 0.0
    %1299 = vmatprep.subr.mxu0 0.0
    %1300 = vmatpush2.xpose.msra.mxu0 0.0
    %1301 = vmatprep.subr.mxu0 0.0
    %1302 = vmatpush2.xpose.msra.mxu0 0.0
    %1303 = vmatprep.subr.mxu0 0.0
    %1304 = vmatpush2.xpose.msra.mxu0 0.0
    %1305 = vmatprep.subr.mxu0 0.0
    %1306 = vmatpush2.xpose.msra.mxu0 0.0
    %1307 = vmatprep.subr.mxu0 0.0
    %1308 = vmatpush2.xpose.msra.mxu0 0.0
    %1309 = vmatprep.subr.mxu0 0.0
    %1310 = vmatpush2.xpose.msra.mxu0 0.0
    %1311 = vmatprep.subr.mxu0 0.0
    %1312 = vmatpush2.xpose.msra.mxu0 0.0
    %1313 = vmatprep.subr.mxu0 0.0
    %1314 = vmatpush2.xpose.msra.mxu0 0.0
    %1315 = vmatprep.subr.mxu0 0.0
    %1316 = vmatpush2.xpose.msra.mxu0 0.0
    %1317 = vmatprep.mubr.f32.mxu0 0.0
    %1318 = vmatmul.mubr.f32.gmra.mxu0 %v1249
    %v1319 = vpop.f32.mrf.mxu0
    %v1320 = vadd.f32 0.0, %v1319
    %v1321 = vpop.f32.mrf.mxu0
    %1322 = vdwg.mxu0
    %1323 = vrot.lane.b32.xlu0 %v253, 104
    %v1324 = vpop.permute.xlu0 %1323
    %1325 = vrot.lane.b32.xlu0 %v249, 72
    %v1326 = vpop.permute.xlu0 %1325
    %v1327 = vsel %vm257, %v1324, 0
    %v1329 = vsel %vm257, %v1326, 0
    %1331 = vmatprep.subr.mxu0 0.0
    %1332 = vmatpush1.xpose.msra.mxu0 0.0
    %1333 = vmatprep.subr.mxu0 0.0
    %1334 = vmatpush1.xpose.msra.mxu0 0.0
    %1335 = vmatprep.subr.mxu0 0.0
    %1336 = vmatpush1.xpose.msra.mxu0 0.0
    %1337 = vmatprep.subr.mxu0 0.0
    %1338 = vmatpush1.xpose.msra.mxu0 0.0
    %1339 = vmatprep.subr.mxu0 0.0
    %1340 = vmatpush1.xpose.msra.mxu0 0.0
    %1341 = vmatprep.subr.mxu0 0.0
    %1342 = vmatpush1.xpose.msra.mxu0 0.0
    %1343 = vmatprep.subr.mxu0 0.0
    %1344 = vmatpush1.xpose.msra.mxu0 0.0
    %1345 = vmatprep.subr.mxu0 0.0
    %1346 = vmatpush1.xpose.msra.mxu0 0.0
    %1347 = vmatprep.subr.mxu0 0.0
    %1348 = vmatpush1.xpose.msra.mxu0 0.0
    %1349 = vmatprep.subr.mxu0 0.0
    %1350 = vmatpush1.xpose.msra.mxu0 0.0
    %1351 = vmatprep.subr.mxu0 0.0
    %1352 = vmatpush1.xpose.msra.mxu0 0.0
    %1353 = vmatprep.subr.mxu0 0.0
    %1354 = vmatpush1.xpose.msra.mxu0 0.0
    %1355 = vmatprep.subr.mxu0 0.0
    %1356 = vmatpush1.xpose.msra.mxu0 0.0
    %1357 = vmatprep.subr.mxu0 0.0
    %1358 = vmatpush1.xpose.msra.mxu0 0.0
    %1359 = vmatprep.subr.mxu0 0.0
    %1360 = vmatpush1.xpose.msra.mxu0 0.0
    %1361 = vmatprep.subr.mxu0 0.0
    %1362 = vmatpush1.xpose.msra.mxu0 %v1329
    %1363 = vmatprep.subr.mxu0 0.0
    %1364 = vmatpush2.xpose.msra.mxu0 0.0
    %1365 = vmatprep.subr.mxu0 0.0
    %1366 = vmatpush2.xpose.msra.mxu0 0.0
    %1367 = vmatprep.subr.mxu0 0.0
    %1368 = vmatpush2.xpose.msra.mxu0 0.0
    %1369 = vmatprep.subr.mxu0 0.0
    %1370 = vmatpush2.xpose.msra.mxu0 0.0
    %1371 = vmatprep.subr.mxu0 0.0
    %1372 = vmatpush2.xpose.msra.mxu0 0.0
    %1373 = vmatprep.subr.mxu0 0.0
    %1374 = vmatpush2.xpose.msra.mxu0 0.0
    %1375 = vmatprep.subr.mxu0 0.0
    %1376 = vmatpush2.xpose.msra.mxu0 0.0
    %1377 = vmatprep.subr.mxu0 0.0
    %1378 = vmatpush2.xpose.msra.mxu0 0.0
    %1379 = vmatprep.subr.mxu0 0.0
    %1380 = vmatpush2.xpose.msra.mxu0 0.0
    %1381 = vmatprep.subr.mxu0 0.0
    %1382 = vmatpush2.xpose.msra.mxu0 0.0
    %1383 = vmatprep.subr.mxu0 0.0
    %1384 = vmatpush2.xpose.msra.mxu0 0.0
    %1385 = vmatprep.subr.mxu0 0.0
    %1386 = vmatpush2.xpose.msra.mxu0 0.0
    %1387 = vmatprep.subr.mxu0 0.0
    %1388 = vmatpush2.xpose.msra.mxu0 0.0
    %1389 = vmatprep.subr.mxu0 0.0
    %1390 = vmatpush2.xpose.msra.mxu0 0.0
    %1391 = vmatprep.subr.mxu0 0.0
    %1392 = vmatpush2.xpose.msra.mxu0 0.0
    %1393 = vmatprep.subr.mxu0 0.0
    %1394 = vmatpush2.xpose.msra.mxu0 0.0
    %1395 = vmatprep.mubr.f32.mxu0 0.0
    %1396 = vmatmul.mubr.f32.gmra.mxu0 %v1327
    %v1397 = vpop.f32.mrf.mxu0
    %v1398 = vadd.f32 0.0, %v1397
    %v1399 = vpop.f32.mrf.mxu0
    %1400 = vdwg.mxu0
    %v1401 = vsel %vm257, %v1320, -inf
    %1402 = vmax.xlane.f32.xlu0 %v1401
    %v1403 = vpop.xlane.xlu0 %1402
    %v1404 = vsel %vm257, %v1398, -inf
    %1405 = vmax.xlane.f32.xlu0 %v1404
    %v1406 = vpop.xlane.xlu0 %1405
    %v1407 = vsub.f32 %v1320, %v1403
    %v1408 = vsub.f32 %v1398, %v1406
    %v1409 = vmul.f32 %v1407, 1.442695
    %v1410 = vpow.pop %v1409
    %v1411 = vmul.f32 %v1408, 1.442695
    %v1412 = vpow.pop %v1411
    %v1413 = vsel %vm257, %v1410, 0.0
    %1414 = vadd.xlane.f32.xlu0 %v1413
    %v1415 = vpop.xlane.xlu0 %1414
    %v1416 = vsel %vm257, %v1412, 0.0
    %1417 = vadd.xlane.f32.xlu0 %v1416
    %v1418 = vpop.xlane.xlu0 %1417
    %v1419 = vrcp.pop %v1415
    %v1420 = vrcp.pop %v1418
    %v1421 = vmul.f32 %v1410, %v1419
    %v1422 = vmul.f32 %v1412, %v1420
    %1423 = vrot.lane.b32.xlu0 %v244, 40
    %v1424 = vpop.permute.xlu0 %1423
    %v1427 = vsel %vm257, %v1421, 0
    %1429 = vmatprep.subr.mxu0 0.0
    %1430 = vmatpush1.msra.mxu0 0.0
    %1431 = vmatprep.subr.mxu0 0.0
    %1432 = vmatpush1.msra.mxu0 0.0
    %1433 = vmatprep.subr.mxu0 0.0
    %1434 = vmatpush1.msra.mxu0 0.0
    %1435 = vmatprep.subr.mxu0 0.0
    %1436 = vmatpush1.msra.mxu0 0.0
    %1437 = vmatprep.subr.mxu0 0.0
    %1438 = vmatpush1.msra.mxu0 0.0
    %1439 = vmatprep.subr.mxu0 0.0
    %1440 = vmatpush1.msra.mxu0 0.0
    %1441 = vmatprep.subr.mxu0 0.0
    %1442 = vmatpush1.msra.mxu0 0.0
    %1443 = vmatprep.subr.mxu0 0.0
    %1444 = vmatpush1.msra.mxu0 0.0
    %1445 = vmatprep.subr.mxu0 0.0
    %1446 = vmatpush1.msra.mxu0 0.0
    %1447 = vmatprep.subr.mxu0 0.0
    %1448 = vmatpush1.msra.mxu0 0.0
    %1449 = vmatprep.subr.mxu0 0.0
    %1450 = vmatpush1.msra.mxu0 0.0
    %1451 = vmatprep.subr.mxu0 0.0
    %1452 = vmatpush1.msra.mxu0 0.0
    %1453 = vmatprep.subr.mxu0 0.0
    %1454 = vmatpush1.msra.mxu0 0.0
    %1455 = vmatprep.subr.mxu0 0.0
    %1456 = vmatpush1.msra.mxu0 0.0
    %1457 = vmatprep.subr.mxu0 0.0
    %1458 = vmatpush1.msra.mxu0 0.0
    %1459 = vmatprep.subr.mxu0 0.0
    %1460 = vmatpush1.msra.mxu0 %v1424
    %1461 = vmatprep.subr.mxu0 0.0
    %1462 = vmatpush2.msra.mxu0 0.0
    %1463 = vmatprep.subr.mxu0 0.0
    %1464 = vmatpush2.msra.mxu0 0.0
    %1465 = vmatprep.subr.mxu0 0.0
    %1466 = vmatpush2.msra.mxu0 0.0
    %1467 = vmatprep.subr.mxu0 0.0
    %1468 = vmatpush2.msra.mxu0 0.0
    %1469 = vmatprep.subr.mxu0 0.0
    %1470 = vmatpush2.msra.mxu0 0.0
    %1471 = vmatprep.subr.mxu0 0.0
    %1472 = vmatpush2.msra.mxu0 0.0
    %1473 = vmatprep.subr.mxu0 0.0
    %1474 = vmatpush2.msra.mxu0 0.0
    %1475 = vmatprep.subr.mxu0 0.0
    %1476 = vmatpush2.msra.mxu0 0.0
    %1477 = vmatprep.subr.mxu0 0.0
    %1478 = vmatpush2.msra.mxu0 0.0
    %1479 = vmatprep.subr.mxu0 0.0
    %1480 = vmatpush2.msra.mxu0 0.0
    %1481 = vmatprep.subr.mxu0 0.0
    %1482 = vmatpush2.msra.mxu0 0.0
    %1483 = vmatprep.subr.mxu0 0.0
    %1484 = vmatpush2.msra.mxu0 0.0
    %1485 = vmatprep.subr.mxu0 0.0
    %1486 = vmatpush2.msra.mxu0 0.0
    %1487 = vmatprep.subr.mxu0 0.0
    %1488 = vmatpush2.msra.mxu0 0.0
    %1489 = vmatprep.subr.mxu0 0.0
    %1490 = vmatpush2.msra.mxu0 0.0
    %1491 = vmatprep.subr.mxu0 0.0
    %1492 = vmatpush2.msra.mxu0 0.0
    %1493 = vmatprep.mubr.f32.mxu0 0.0
    %1494 = vmatmul.mubr.f32.gmra.mxu0 %v1427
    %v1495 = vpop.f32.mrf.mxu0
    %v1496 = vadd.f32 0.0, %v1495
    %v1497 = vpop.f32.mrf.mxu0
    %1498 = vdwg.mxu0
    %1499 = vrot.lane.b32.xlu0 %v249, 40
    %v1500 = vpop.permute.xlu0 %1499
    %v1503 = vsel %vm257, %v1422, 0
    %1505 = vmatprep.subr.mxu0 0.0
    %1506 = vmatpush1.msra.mxu0 0.0
    %1507 = vmatprep.subr.mxu0 0.0
    %1508 = vmatpush1.msra.mxu0 0.0
    %1509 = vmatprep.subr.mxu0 0.0
    %1510 = vmatpush1.msra.mxu0 0.0
    %1511 = vmatprep.subr.mxu0 0.0
    %1512 = vmatpush1.msra.mxu0 0.0
    %1513 = vmatprep.subr.mxu0 0.0
    %1514 = vmatpush1.msra.mxu0 0.0
    %1515 = vmatprep.subr.mxu0 0.0
    %1516 = vmatpush1.msra.mxu0 0.0
    %1517 = vmatprep.subr.mxu0 0.0
    %1518 = vmatpush1.msra.mxu0 0.0
    %1519 = vmatprep.subr.mxu0 0.0
    %1520 = vmatpush1.msra.mxu0 0.0
    %1521 = vmatprep.subr.mxu0 0.0
    %1522 = vmatpush1.msra.mxu0 0.0
    %1523 = vmatprep.subr.mxu0 0.0
    %1524 = vmatpush1.msra.mxu0 0.0
    %1525 = vmatprep.subr.mxu0 0.0
    %1526 = vmatpush1.msra.mxu0 0.0
    %1527 = vmatprep.subr.mxu0 0.0
    %1528 = vmatpush1.msra.mxu0 0.0
    %1529 = vmatprep.subr.mxu0 0.0
    %1530 = vmatpush1.msra.mxu0 0.0
    %1531 = vmatprep.subr.mxu0 0.0
    %1532 = vmatpush1.msra.mxu0 0.0
    %1533 = vmatprep.subr.mxu0 0.0
    %1534 = vmatpush1.msra.mxu0 0.0
    %1535 = vmatprep.subr.mxu0 0.0
    %1536 = vmatpush1.msra.mxu0 %v1500
    %1537 = vmatprep.subr.mxu0 0.0
    %1538 = vmatpush2.msra.mxu0 0.0
    %1539 = vmatprep.subr.mxu0 0.0
    %1540 = vmatpush2.msra.mxu0 0.0
    %1541 = vmatprep.subr.mxu0 0.0
    %1542 = vmatpush2.msra.mxu0 0.0
    %1543 = vmatprep.subr.mxu0 0.0
    %1544 = vmatpush2.msra.mxu0 0.0
    %1545 = vmatprep.subr.mxu0 0.0
    %1546 = vmatpush2.msra.mxu0 0.0
    %1547 = vmatprep.subr.mxu0 0.0
    %1548 = vmatpush2.msra.mxu0 0.0
    %1549 = vmatprep.subr.mxu0 0.0
    %1550 = vmatpush2.msra.mxu0 0.0
    %1551 = vmatprep.subr.mxu0 0.0
    %1552 = vmatpush2.msra.mxu0 0.0
    %1553 = vmatprep.subr.mxu0 0.0
    %1554 = vmatpush2.msra.mxu0 0.0
    %1555 = vmatprep.subr.mxu0 0.0
    %1556 = vmatpush2.msra.mxu0 0.0
    %1557 = vmatprep.subr.mxu0 0.0
    %1558 = vmatpush2.msra.mxu0 0.0
    %1559 = vmatprep.subr.mxu0 0.0
    %1560 = vmatpush2.msra.mxu0 0.0
    %1561 = vmatprep.subr.mxu0 0.0
    %1562 = vmatpush2.msra.mxu0 0.0
    %1563 = vmatprep.subr.mxu0 0.0
    %1564 = vmatpush2.msra.mxu0 0.0
    %1565 = vmatprep.subr.mxu0 0.0
    %1566 = vmatpush2.msra.mxu0 0.0
    %1567 = vmatprep.subr.mxu0 0.0
    %1568 = vmatpush2.msra.mxu0 0.0
    %1569 = vmatprep.mubr.f32.mxu0 0.0
    %1570 = vmatmul.mubr.f32.gmra.mxu0 %v1503
    %v1571 = vpop.f32.mrf.mxu0
    %v1572 = vadd.f32 0.0, %v1571
    %v1573 = vpop.f32.mrf.mxu0
    %1574 = vdwg.mxu0
    %1577 = vrot.lane.b32.xlu0 %v836, 8
    %v1578 = vpop.permute.xlu0 %1577
    %1579 = vrot.lane.b32.xlu0 %v912, 8
    %v1580 = vpop.permute.xlu0 %1579
    %1585 = vrot.lane.b32.xlu0 %v1166, 16
    %v1586 = vpop.permute.xlu0 %1585
    %1587 = vrot.lane.b32.xlu0 %v1242, 16
    %v1588 = vpop.permute.xlu0 %1587
    %1593 = vrot.lane.b32.xlu0 %v1496, 24
    %v1594 = vpop.permute.xlu0 %1593
    %1595 = vrot.lane.b32.xlu0 %v1572, 24
    %v1596 = vpop.permute.xlu0 %1595
    %v1599 = vsel %vm257, %v506, %v1578
    %v1600 = vsel %vm257, %v582, %v1580
    %vm1601 = vcmask 130048
    %v1602 = vsel %vm1601, %v1599, %v1586
    %v1603 = vsel %vm1601, %v1600, %v1588
    %vm1604 = vcmask 195584
    %v1605 = vsel %vm1604, %v1602, %v1594
    %v1606 = vsel %vm1604, %v1603, %v1596
    %v1607 = vld [vmem:[%s4] sm:$0xff]
    %v1608 = vld [vmem:[%s4 + $0x10] sm:$0xff]
    %v1609 = vld [vmem:[%s4 + $0x20] sm:$0xff]
    %v1610 = vld [vmem:[%s4 + $0x30] sm:$0xff]
    %v1611 = vlaneseq
    %v1612 = vshrl.u32 %v1611, 7
    %v1613 = vsub.s32 0, %v1612
    %v1614 = vrot.slane %v27, %v1613
    %1619 = vrot.lane.b32.xlu0 %v1607, 32
    %v1620 = vpop.permute.xlu0 %1619
    %1621 = vrot.lane.b32.xlu0 %v1608, 32
    %v1622 = vpop.permute.xlu0 %1621
    %1623 = vrot.lane.b32.xlu0 %v1609, 32
    %v1624 = vpop.permute.xlu0 %1623
    %1625 = vrot.lane.b32.xlu0 %v1610, 32
    %v1626 = vpop.permute.xlu0 %1625
    %v1632 = vsel %vm170, %v1605, 0
    %v1635 = vsel %vm170, %v1606, 0
    %1637 = vmatprep.subr.mxu0 0.0
    %1638 = vmatpush1.msra.mxu0 0.0
    %1639 = vmatprep.subr.mxu0 0.0
    %1640 = vmatpush1.msra.mxu0 0.0
    %1641 = vmatprep.subr.mxu0 0.0
    %1642 = vmatpush1.msra.mxu0 0.0
    %1643 = vmatprep.subr.mxu0 0.0
    %1644 = vmatpush1.msra.mxu0 0.0
    %1645 = vmatprep.subr.mxu0 0.0
    %1646 = vmatpush1.msra.mxu0 0.0
    %1647 = vmatprep.subr.mxu0 0.0
    %1648 = vmatpush1.msra.mxu0 0.0
    %1649 = vmatprep.subr.mxu0 0.0
    %1650 = vmatpush1.msra.mxu0 0.0
    %1651 = vmatprep.subr.mxu0 0.0
    %1652 = vmatpush1.msra.mxu0 0.0
    %1653 = vmatprep.subr.mxu0 0.0
    %1654 = vmatpush1.msra.mxu0 0.0
    %1655 = vmatprep.subr.mxu0 0.0
    %1656 = vmatpush1.msra.mxu0 0.0
    %1657 = vmatprep.subr.mxu0 0.0
    %1658 = vmatpush1.msra.mxu0 0.0
    %1659 = vmatprep.subr.mxu0 0.0
    %1660 = vmatpush1.msra.mxu0 0.0
    %1661 = vmatprep.subr.mxu0 0.0
    %1662 = vmatpush1.msra.mxu0 %v1626
    %1663 = vmatprep.subr.mxu0 0.0
    %1664 = vmatpush1.msra.mxu0 %v1624
    %1665 = vmatprep.subr.mxu0 0.0
    %1666 = vmatpush1.msra.mxu0 %v1622
    %1667 = vmatprep.subr.mxu0 0.0
    %1668 = vmatpush1.msra.mxu0 %v1620
    %1669 = vmatprep.subr.mxu0 0.0
    %1670 = vmatpush2.msra.mxu0 0.0
    %1671 = vmatprep.subr.mxu0 0.0
    %1672 = vmatpush2.msra.mxu0 0.0
    %1673 = vmatprep.subr.mxu0 0.0
    %1674 = vmatpush2.msra.mxu0 0.0
    %1675 = vmatprep.subr.mxu0 0.0
    %1676 = vmatpush2.msra.mxu0 0.0
    %1677 = vmatprep.subr.mxu0 0.0
    %1678 = vmatpush2.msra.mxu0 0.0
    %1679 = vmatprep.subr.mxu0 0.0
    %1680 = vmatpush2.msra.mxu0 0.0
    %1681 = vmatprep.subr.mxu0 0.0
    %1682 = vmatpush2.msra.mxu0 0.0
    %1683 = vmatprep.subr.mxu0 0.0
    %1684 = vmatpush2.msra.mxu0 0.0
    %1685 = vmatprep.subr.mxu0 0.0
    %1686 = vmatpush2.msra.mxu0 0.0
    %1687 = vmatprep.subr.mxu0 0.0
    %1688 = vmatpush2.msra.mxu0 0.0
    %1689 = vmatprep.subr.mxu0 0.0
    %1690 = vmatpush2.msra.mxu0 0.0
    %1691 = vmatprep.subr.mxu0 0.0
    %1692 = vmatpush2.msra.mxu0 0.0
    %1693 = vmatprep.subr.mxu0 0.0
    %1694 = vmatpush2.msra.mxu0 0.0
    %1695 = vmatprep.subr.mxu0 0.0
    %1696 = vmatpush2.msra.mxu0 0.0
    %1697 = vmatprep.subr.mxu0 0.0
    %1698 = vmatpush2.msra.mxu0 0.0
    %1699 = vmatprep.subr.mxu0 0.0
    %1700 = vmatpush2.msra.mxu0 0.0
    %1701 = vmatprep.mubr.f32.mxu0 0.0
    %1702 = vmatmul.mubr.f32.gmra.mxu0 %v1632
    %v1703 = vpop.f32.mrf.mxu0
    %v1704 = vadd.f32 %v1614, %v1703
    %v1705 = vpop.f32.mrf.mxu0
    %1706 = vmatprep.mubr.f32.mxu0 0.0
    %1707 = vmatmul.mubr.f32.gmra.mxu0 %v1635
    %v1708 = vpop.f32.mrf.mxu0
    %v1709 = vadd.f32 %v1614, %v1708
    %v1710 = vpop.f32.mrf.mxu0
    %1711 = vdwg.mxu0
    %v1712 = vld [vmem:[%s4 + $0x8] sm:$0xff]
    %v1713 = vld [vmem:[%s4 + $0x18] sm:$0xff]
    %v1714 = vld [vmem:[%s4 + $0x28] sm:$0xff]
    %v1715 = vld [vmem:[%s4 + $0x38] sm:$0xff]
    %v1716 = vlaneseq
    %v1717 = vshrl.u32 %v1716, 7
    %v1718 = vsub.s32 0, %v1717
    %v1719 = vrot.slane %v28, %v1718
    %v1721 = vsel %vm170, %v1704, 0
    %v1724 = vsel %vm170, %v1709, 0
    %1726 = vmatprep.subr.mxu0 0.0
    %1727 = vmatpush1.msra.mxu0 0.0
    %1728 = vmatprep.subr.mxu0 0.0
    %1729 = vmatpush1.msra.mxu0 0.0
    %1730 = vmatprep.subr.mxu0 0.0
    %1731 = vmatpush1.msra.mxu0 0.0
    %1732 = vmatprep.subr.mxu0 0.0
    %1733 = vmatpush1.msra.mxu0 0.0
    %1734 = vmatprep.subr.mxu0 0.0
    %1735 = vmatpush1.msra.mxu0 0.0
    %1736 = vmatprep.subr.mxu0 0.0
    %1737 = vmatpush1.msra.mxu0 0.0
    %1738 = vmatprep.subr.mxu0 0.0
    %1739 = vmatpush1.msra.mxu0 0.0
    %1740 = vmatprep.subr.mxu0 0.0
    %1741 = vmatpush1.msra.mxu0 0.0
    %1742 = vmatprep.subr.mxu0 0.0
    %1743 = vmatpush1.msra.mxu0 0.0
    %1744 = vmatprep.subr.mxu0 0.0
    %1745 = vmatpush1.msra.mxu0 0.0
    %1746 = vmatprep.subr.mxu0 0.0
    %1747 = vmatpush1.msra.mxu0 0.0
    %1748 = vmatprep.subr.mxu0 0.0
    %1749 = vmatpush1.msra.mxu0 0.0
    %1750 = vmatprep.subr.mxu0 0.0
    %1751 = vmatpush1.msra.mxu0 %v1715
    %1752 = vmatprep.subr.mxu0 0.0
    %1753 = vmatpush1.msra.mxu0 %v1714
    %1754 = vmatprep.subr.mxu0 0.0
    %1755 = vmatpush1.msra.mxu0 %v1713
    %1756 = vmatprep.subr.mxu0 0.0
    %1757 = vmatpush1.msra.mxu0 %v1712
    %1758 = vmatprep.subr.mxu0 0.0
    %1759 = vmatpush2.msra.mxu0 0.0
    %1760 = vmatprep.subr.mxu0 0.0
    %1761 = vmatpush2.msra.mxu0 0.0
    %1762 = vmatprep.subr.mxu0 0.0
    %1763 = vmatpush2.msra.mxu0 0.0
    %1764 = vmatprep.subr.mxu0 0.0
    %1765 = vmatpush2.msra.mxu0 0.0
    %1766 = vmatprep.subr.mxu0 0.0
    %1767 = vmatpush2.msra.mxu0 0.0
    %1768 = vmatprep.subr.mxu0 0.0
    %1769 = vmatpush2.msra.mxu0 0.0
    %1770 = vmatprep.subr.mxu0 0.0
    %1771 = vmatpush2.msra.mxu0 0.0
    %1772 = vmatprep.subr.mxu0 0.0
    %1773 = vmatpush2.msra.mxu0 0.0
    %1774 = vmatprep.subr.mxu0 0.0
    %1775 = vmatpush2.msra.mxu0 0.0
    %1776 = vmatprep.subr.mxu0 0.0
    %1777 = vmatpush2.msra.mxu0 0.0
    %1778 = vmatprep.subr.mxu0 0.0
    %1779 = vmatpush2.msra.mxu0 0.0
    %1780 = vmatprep.subr.mxu0 0.0
    %1781 = vmatpush2.msra.mxu0 0.0
    %1782 = vmatprep.subr.mxu0 0.0
    %1783 = vmatpush2.msra.mxu0 0.0
    %1784 = vmatprep.subr.mxu0 0.0
    %1785 = vmatpush2.msra.mxu0 0.0
    %1786 = vmatprep.subr.mxu0 0.0
    %1787 = vmatpush2.msra.mxu0 0.0
    %1788 = vmatprep.subr.mxu0 0.0
    %1789 = vmatpush2.msra.mxu0 0.0
    %1790 = vmatprep.mubr.f32.mxu0 0.0
    %1791 = vmatmul.mubr.f32.gmra.mxu0 %v1721
    %v1792 = vpop.f32.mrf.mxu0
    %v1793 = vadd.f32 %v1719, %v1792
    %v1794 = vpop.f32.mrf.mxu0
    %1795 = vmatprep.mubr.f32.mxu0 0.0
    %1796 = vmatmul.mubr.f32.gmra.mxu0 %v1724
    %v1797 = vpop.f32.mrf.mxu0
    %v1798 = vadd.f32 %v1719, %v1797
    %v1799 = vpop.f32.mrf.mxu0
    %1800 = vdwg.mxu0
    %v1801 = vmax.f32 %v1793, 0.0
    %v1802 = vmax.f32 %v1798, 0.0
    %v1803 = vlaneseq
    %v1804 = vshrl.u32 %v1803, 7
    %v1805 = vsub.s32 0, %v1804
    %v1806 = vrot.slane %v29, %v1805
    %1811 = vrot.lane.b32.xlu0 %v1712, 96
    %v1812 = vpop.permute.xlu0 %1811
    %1813 = vrot.lane.b32.xlu0 %v1713, 96
    %v1814 = vpop.permute.xlu0 %1813
    %1815 = vrot.lane.b32.xlu0 %v1714, 96
    %v1816 = vpop.permute.xlu0 %1815
    %1817 = vrot.lane.b32.xlu0 %v1715, 96
    %v1818 = vpop.permute.xlu0 %1817
    %v1824 = vsel %vm170, %v1801, 0
    %v1827 = vsel %vm170, %v1802, 0
    %1829 = vmatprep.subr.mxu0 0.0
    %1830 = vmatpush1.msra.mxu0 0.0
    %1831 = vmatprep.subr.mxu0 0.0
    %1832 = vmatpush1.msra.mxu0 0.0
    %1833 = vmatprep.subr.mxu0 0.0
    %1834 = vmatpush1.msra.mxu0 0.0
    %1835 = vmatprep.subr.mxu0 0.0
    %1836 = vmatpush1.msra.mxu0 0.0
    %1837 = vmatprep.subr.mxu0 0.0
    %1838 = vmatpush1.msra.mxu0 0.0
    %1839 = vmatprep.subr.mxu0 0.0
    %1840 = vmatpush1.msra.mxu0 0.0
    %1841 = vmatprep.subr.mxu0 0.0
    %1842 = vmatpush1.msra.mxu0 0.0
    %1843 = vmatprep.subr.mxu0 0.0
    %1844 = vmatpush1.msra.mxu0 0.0
    %1845 = vmatprep.subr.mxu0 0.0
    %1846 = vmatpush1.msra.mxu0 0.0
    %1847 = vmatprep.subr.mxu0 0.0
    %1848 = vmatpush1.msra.mxu0 0.0
    %1849 = vmatprep.subr.mxu0 0.0
    %1850 = vmatpush1.msra.mxu0 0.0
    %1851 = vmatprep.subr.mxu0 0.0
    %1852 = vmatpush1.msra.mxu0 0.0
    %1853 = vmatprep.subr.mxu0 0.0
    %1854 = vmatpush1.msra.mxu0 %v1818
    %1855 = vmatprep.subr.mxu0 0.0
    %1856 = vmatpush1.msra.mxu0 %v1816
    %1857 = vmatprep.subr.mxu0 0.0
    %1858 = vmatpush1.msra.mxu0 %v1814
    %1859 = vmatprep.subr.mxu0 0.0
    %1860 = vmatpush1.msra.mxu0 %v1812
    %1861 = vmatprep.subr.mxu0 0.0
    %1862 = vmatpush2.msra.mxu0 0.0
    %1863 = vmatprep.subr.mxu0 0.0
    %1864 = vmatpush2.msra.mxu0 0.0
    %1865 = vmatprep.subr.mxu0 0.0
    %1866 = vmatpush2.msra.mxu0 0.0
    %1867 = vmatprep.subr.mxu0 0.0
    %1868 = vmatpush2.msra.mxu0 0.0
    %1869 = vmatprep.subr.mxu0 0.0
    %1870 = vmatpush2.msra.mxu0 0.0
    %1871 = vmatprep.subr.mxu0 0.0
    %1872 = vmatpush2.msra.mxu0 0.0
    %1873 = vmatprep.subr.mxu0 0.0
    %1874 = vmatpush2.msra.mxu0 0.0
    %1875 = vmatprep.subr.mxu0 0.0
    %1876 = vmatpush2.msra.mxu0 0.0
    %1877 = vmatprep.subr.mxu0 0.0
    %1878 = vmatpush2.msra.mxu0 0.0
    %1879 = vmatprep.subr.mxu0 0.0
    %1880 = vmatpush2.msra.mxu0 0.0
    %1881 = vmatprep.subr.mxu0 0.0
    %1882 = vmatpush2.msra.mxu0 0.0
    %1883 = vmatprep.subr.mxu0 0.0
    %1884 = vmatpush2.msra.mxu0 0.0
    %1885 = vmatprep.subr.mxu0 0.0
    %1886 = vmatpush2.msra.mxu0 0.0
    %1887 = vmatprep.subr.mxu0 0.0
    %1888 = vmatpush2.msra.mxu0 0.0
    %1889 = vmatprep.subr.mxu0 0.0
    %1890 = vmatpush2.msra.mxu0 0.0
    %1891 = vmatprep.subr.mxu0 0.0
    %1892 = vmatpush2.msra.mxu0 0.0
    %1893 = vmatprep.mubr.f32.mxu0 0.0
    %1894 = vmatmul.mubr.f32.gmra.mxu0 %v1824
    %v1895 = vpop.f32.mrf.mxu0
    %v1896 = vadd.f32 %v1806, %v1895
    %v1897 = vpop.f32.mrf.mxu0
    %1898 = vmatprep.mubr.f32.mxu0 0.0
    %1899 = vmatmul.mubr.f32.gmra.mxu0 %v1827
    %v1900 = vpop.f32.mrf.mxu0
    %v1901 = vadd.f32 %v1806, %v1900
    %v1902 = vpop.f32.mrf.mxu0
    %1903 = vdwg.mxu0
    %v1904 = vsel %vm170, %v1896, 0.0
    %v1905 = vrot.slane %v1904, 4
    %v1906 = vadd.f32 %v1904, %v1905
    %v1907 = vrot.slane %v1906, 2
    %v1908 = vadd.f32 %v1906, %v1907
    %v1909 = vrot.slane %v1908, 1
    %v1910 = vadd.f32 %v1908, %v1909
    %v1911 = vsel %vm170, %v1901, 0.0
    %v1912 = vrot.slane %v1911, 4
    %v1913 = vadd.f32 %v1911, %v1912
    %v1914 = vrot.slane %v1913, 2
    %v1915 = vadd.f32 %v1913, %v1914
    %v1916 = vrot.slane %v1915, 1
    %v1917 = vadd.f32 %v1915, %v1916
    %v1918 = vrcp.pop 8.0
    %v1919 = vmul.f32 %v1910, %v1918
    %v1920 = vmul.f32 %v1917, %v1918
    %v1921 = vlaneseq
    %v1922 = vshrl.u32 %v1921, 7
    %v1923 = vsub.s32 0, %v1922
    %v1924 = vrot.slane %v30, %v1923
    %vm1927 = vcmask 1041409
    %v1928 = vsel %vm1927, %v1920, %v1919
    %1929 = vrot.lane.b32.xlu0 %v1712, 64
    %v1930 = vpop.permute.xlu0 %1929
    %1931 = vrot.lane.b32.xlu0 %v1713, 64
    %v1932 = vpop.permute.xlu0 %1931
    %1933 = vrot.lane.b32.xlu0 %v1714, 64
    %v1934 = vpop.permute.xlu0 %1933
    %1935 = vrot.lane.b32.xlu0 %v1715, 64
    %v1936 = vpop.permute.xlu0 %1935
    %v1941 = vsel %vm170, %v1928, 0
    %1943 = vmatprep.subr.mxu0 0.0
    %1944 = vmatpush1.msra.mxu0 0.0
    %1945 = vmatprep.subr.mxu0 0.0
    %1946 = vmatpush1.msra.mxu0 0.0
    %1947 = vmatprep.subr.mxu0 0.0
    %1948 = vmatpush1.msra.mxu0 0.0
    %1949 = vmatprep.subr.mxu0 0.0
    %1950 = vmatpush1.msra.mxu0 0.0
    %1951 = vmatprep.subr.mxu0 0.0
    %1952 = vmatpush1.msra.mxu0 0.0
    %1953 = vmatprep.subr.mxu0 0.0
    %1954 = vmatpush1.msra.mxu0 0.0
    %1955 = vmatprep.subr.mxu0 0.0
    %1956 = vmatpush1.msra.mxu0 0.0
    %1957 = vmatprep.subr.mxu0 0.0
    %1958 = vmatpush1.msra.mxu0 0.0
    %1959 = vmatprep.subr.mxu0 0.0
    %1960 = vmatpush1.msra.mxu0 0.0
    %1961 = vmatprep.subr.mxu0 0.0
    %1962 = vmatpush1.msra.mxu0 0.0
    %1963 = vmatprep.subr.mxu0 0.0
    %1964 = vmatpush1.msra.mxu0 0.0
    %1965 = vmatprep.subr.mxu0 0.0
    %1966 = vmatpush1.msra.mxu0 0.0
    %1967 = vmatprep.subr.mxu0 0.0
    %1968 = vmatpush1.msra.mxu0 %v1936
    %1969 = vmatprep.subr.mxu0 0.0
    %1970 = vmatpush1.msra.mxu0 %v1934
    %1971 = vmatprep.subr.mxu0 0.0
    %1972 = vmatpush1.msra.mxu0 %v1932
    %1973 = vmatprep.subr.mxu0 0.0
    %1974 = vmatpush1.msra.mxu0 %v1930
    %1975 = vmatprep.subr.mxu0 0.0
    %1976 = vmatpush2.msra.mxu0 0.0
    %1977 = vmatprep.subr.mxu0 0.0
    %1978 = vmatpush2.msra.mxu0 0.0
    %1979 = vmatprep.subr.mxu0 0.0
    %1980 = vmatpush2.msra.mxu0 0.0
    %1981 = vmatprep.subr.mxu0 0.0
    %1982 = vmatpush2.msra.mxu0 0.0
    %1983 = vmatprep.subr.mxu0 0.0
    %1984 = vmatpush2.msra.mxu0 0.0
    %1985 = vmatprep.subr.mxu0 0.0
    %1986 = vmatpush2.msra.mxu0 0.0
    %1987 = vmatprep.subr.mxu0 0.0
    %1988 = vmatpush2.msra.mxu0 0.0
    %1989 = vmatprep.subr.mxu0 0.0
    %1990 = vmatpush2.msra.mxu0 0.0
    %1991 = vmatprep.subr.mxu0 0.0
    %1992 = vmatpush2.msra.mxu0 0.0
    %1993 = vmatprep.subr.mxu0 0.0
    %1994 = vmatpush2.msra.mxu0 0.0
    %1995 = vmatprep.subr.mxu0 0.0
    %1996 = vmatpush2.msra.mxu0 0.0
    %1997 = vmatprep.subr.mxu0 0.0
    %1998 = vmatpush2.msra.mxu0 0.0
    %1999 = vmatprep.subr.mxu0 0.0
    %2000 = vmatpush2.msra.mxu0 0.0
    %2001 = vmatprep.subr.mxu0 0.0
    %2002 = vmatpush2.msra.mxu0 0.0
    %2003 = vmatprep.subr.mxu0 0.0
    %2004 = vmatpush2.msra.mxu0 0.0
    %2005 = vmatprep.subr.mxu0 0.0
    %2006 = vmatpush2.msra.mxu0 0.0
    %2007 = vmatprep.mubr.f32.mxu0 0.0
    %2008 = vmatmul.mubr.f32.gmra.mxu0 %v1941
    %v2009 = vpop.f32.mrf.mxu0
    %v2010 = vadd.f32 %v1924, %v2009
    %v2011 = vpop.f32.mrf.mxu0
    %2012 = vdwg.mxu0
    %vm2013 = vcmask 17408
    %2014 = vst.msk [vmem:[#allocation2] sm:$0x3] %vm2013, %v2010
    // Predicated region
    $region26: #{attention_model_forward.1} parent=1 // pred_check
      _
    $region27: #{attention_model_forward.1} parent=1 // pred_check_branch
      %2016 = sbr.rel (0) target = $region29
    $region28: #{attention_model_forward.1} parent=1 // pred_region
      %s2018 = ssub.s32 32, 32
      %2019 = vsyncadd [#allocation3], %s2018
      %s2021 = sshll.u32 [#allocation2], 4
      %s2022 = int_to_ptr.vmem [resolvable:$true] %s2021
      %2024 = dma.vmem_to_hbm [thread:$0]  %s2022, 32, %s6, [#allocation3]
    $region29: #{attention_model_forward.1} parent=1 // pred_fallthru
      _
    // Predicated region
    $region30: #{attention_model_forward.1} parent=1 // pred_check
      _
    $region31: #{attention_model_forward.1} parent=1 // pred_check_branch
      %2026 = sbr.rel (0) target = $region33
    $region32: #{attention_model_forward.1} parent=1 // pred_region
      %2027 = dma.done [#allocation3], 32
    $region33: #{attention_model_forward.1} parent=1 // pred_fallthru
      _
    %2028 = vsyncpa [#allocation3], 1

</llo_original>
